<compile_context>
chip_gen: v5e
topology: v5e:2x2
jax: 0.10.0
libtpu: 0.0.40
codegen_flags: <defaults>
</compile_context>

<pallas_src>
import functools

import jax
import jax.numpy as jnp
from jax import lax
from jax.experimental import pallas as pl
from jax.experimental.pallas import tpu as pltpu

_VMEM_LIMIT = 32 * 1024 * 1024
_ROW_CANDS = (1024, 512, 256, 128, 64, 32, 16, 8)


def _round_up(x, m):
    return ((x + m - 1) // m) * m


def _pick_rows(m, row_bytes, budget):
    """Largest row-tile from _ROW_CANDS that divides m and fits the byte budget."""
    cap = max(8, min(_ROW_CANDS[0], budget // max(int(row_bytes), 1)))
    for t in _ROW_CANDS:
        if t <= cap and m % t == 0:
            return t, m
    return 8, _round_up(max(m, 8), 8)        # rare: pad rows to a multiple of 8


def _pick_cols(n, col_bytes, budget=3 << 20):
    """Output-channel tile: 512/256/128 if they divide n (budget permitting), else full n."""
    best = None
    for t in (512, 256, 128):
        if n % t == 0:
            if best is None:
                best = t
            if col_bytes * t <= budget:
                return t
    return best if best is not None else n


# ---------------------------------------------------------------------------
# Matmul (full-K block, no scratch accumulator, bf16 in / f32 accumulate)
# ---------------------------------------------------------------------------

def _matmul_kernel(a_ref, b_ref, o_ref):
    o_ref[...] = jnp.dot(a_ref[...], b_ref[...],
                         preferred_element_type=jnp.float32).astype(o_ref.dtype)


def pallas_matmul(a, b, out_dtype=jnp.bfloat16):
    M, K = a.shape
    K2, N = b.shape
    assert K == K2
    tm, Mp = _pick_rows(M, K * jnp.dtype(a.dtype).itemsize, budget=2 << 20)
    tn = _pick_cols(N, K * jnp.dtype(b.dtype).itemsize)
    if Mp != M:
        a = jnp.pad(a, ((0, Mp - M), (0, 0)))
    out = pl.pallas_call(
        _matmul_kernel,
        out_shape=jax.ShapeDtypeStruct((Mp, N), out_dtype),
        grid_spec=pltpu.PrefetchScalarGridSpec(
            num_scalar_prefetch=0,
            grid=(Mp // tm, N // tn),
            in_specs=[pl.BlockSpec((tm, K), lambda i, j: (i, 0)),
                      pl.BlockSpec((K, tn), lambda i, j: (0, j))],
            out_specs=pl.BlockSpec((tm, tn), lambda i, j: (i, j))),
        compiler_params=pltpu.CompilerParams(
            dimension_semantics=("parallel", "parallel"),
            vmem_limit_bytes=_VMEM_LIMIT),
    )(a, b)
    return out[:M] if Mp != M else out


# ---------------------------------------------------------------------------
# KxK conv as kk accumulated matmuls inside one kernel (taps are pipelined inputs)
# ---------------------------------------------------------------------------

def _make_conv_taps_kernel(kk):
    def kernel(*refs):
        w_ref = refs[kk]
        o_ref = refs[kk + 1]
        acc = jnp.dot(refs[0][...], w_ref[0], preferred_element_type=jnp.float32)
        for t in range(1, kk):
            acc = acc + jnp.dot(refs[t][...], w_ref[t],
                                preferred_element_type=jnp.float32)
        o_ref[...] = acc.astype(o_ref.dtype)
    return kernel


def pallas_conv_taps(taps, w3, out_dtype=jnp.bfloat16):
    kk = len(taps)
    M, cin = taps[0].shape
    cout = w3.shape[-1]
    tm, Mp = _pick_rows(M, kk * cin * jnp.dtype(taps[0].dtype).itemsize, budget=3 << 20)
    tn = _pick_cols(cout, kk * cin * jnp.dtype(w3.dtype).itemsize)
    if Mp != M:
        taps = [jnp.pad(t, ((0, Mp - M), (0, 0))) for t in taps]
    in_specs = [pl.BlockSpec((tm, cin), lambda i, j: (i, 0)) for _ in range(kk)]
    in_specs.append(pl.BlockSpec((kk, cin, tn), lambda i, j: (0, 0, j)))
    out = pl.pallas_call(
        _make_conv_taps_kernel(kk),
        out_shape=jax.ShapeDtypeStruct((Mp, cout), out_dtype),
        grid_spec=pltpu.PrefetchScalarGridSpec(
            num_scalar_prefetch=0,
            grid=(Mp // tm, cout // tn),
            in_specs=in_specs,
            out_specs=pl.BlockSpec((tm, tn), lambda i, j: (i, j))),
        compiler_params=pltpu.CompilerParams(
            dimension_semantics=("parallel", "parallel"),
            vmem_limit_bytes=_VMEM_LIMIT),
    )(*taps, w3)
    return out[:M] if Mp != M else out


def _im2col(x, kh, kw, stride, pad):
    # only used for the 7x7 stem (Cin=3); K = 147 stays a full (unpadded) block.
    N, H, W, C = x.shape
    Ho = (H + 2 * pad - kh) // stride + 1
    Wo = (W + 2 * pad - kw) // stride + 1
    xp = jnp.pad(x, ((0, 0), (pad, pad), (pad, pad), (0, 0)))
    cols = []
    for dy in range(kh):
        for dx in range(kw):
            cols.append(xp[:, dy:dy + stride * (Ho - 1) + 1:stride,
                           dx:dx + stride * (Wo - 1) + 1:stride, :])
    patches = jnp.concatenate(cols, axis=-1)
    return patches.reshape(N * Ho * Wo, kh * kw * C), (N, Ho, Wo)


def conv_kxk(x, w_hwio, stride, pad, out_dtype=jnp.bfloat16):
    kh, kw, cin, cout = w_hwio.shape
    N, H, W, C = x.shape
    Ho = (H + 2 * pad - kh) // stride + 1
    Wo = (W + 2 * pad - kw) // stride + 1
    xp = jnp.pad(x, ((0, 0), (pad, pad), (pad, pad), (0, 0)))
    taps = []
    for dy in range(kh):
        for dx in range(kw):
            sl = lax.slice(
                xp, (0, dy, dx, 0),
                (N, dy + stride * (Ho - 1) + 1, dx + stride * (Wo - 1) + 1, C),
                (1, stride, stride, 1))
            taps.append(sl.reshape(N * Ho * Wo, C))
    out = pallas_conv_taps(taps, w_hwio.reshape(kh * kw, cin, cout), out_dtype)
    return out.reshape(N, Ho, Wo, cout)


def conv2d_nhwc(x, w_hwio, stride=1, pad=0, out_dtype=jnp.bfloat16):
    kh, kw, cin, cout = w_hwio.shape
    if kh == 1 and kw == 1:
        if stride > 1:
            x = x[:, ::stride, ::stride, :]
        N, H, W, C = x.shape
        out = pallas_matmul(x.reshape(N * H * W, C), w_hwio.reshape(cin, cout), out_dtype)
        return out.reshape(N, H, W, cout)
    if kh * kw <= 9:
        return conv_kxk(x, w_hwio, stride, pad, out_dtype)
    # 7x7 stem: unpadded im2col + full-K matmul
    patches, (N, Ho, Wo) = _im2col(x, kh, kw, stride, pad)
    out = pallas_matmul(patches, w_hwio.reshape(kh * kw * cin, cout), out_dtype)
    return out.reshape(N, Ho, Wo, cout)


# ---------------------------------------------------------------------------
# Row-tiled elementwise pallas_call helper
# ---------------------------------------------------------------------------

def _row_tiled(kernel_fn, xs, bcast, out_dtype, out_c):
    M = xs[0].shape[0]
    row_bytes = sum(int(x.shape[1]) * jnp.dtype(x.dtype).itemsize for x in xs)
    tm, Mp = _pick_rows(M, row_bytes, budget=1 << 20)
    if Mp != M:
        xs = [jnp.pad(x, ((0, Mp - M), (0, 0))) for x in xs]
    in_specs = [pl.BlockSpec((tm, int(x.shape[1])), lambda i: (i, 0)) for x in xs]
    in_specs += [pl.BlockSpec(tuple(int(d) for d in b.shape), lambda i: (0, 0))
                 for b in bcast]
    out = pl.pallas_call(
        kernel_fn,
        out_shape=jax.ShapeDtypeStruct((Mp, out_c), out_dtype),
        grid_spec=pltpu.PrefetchScalarGridSpec(
            num_scalar_prefetch=0,
            grid=(Mp // tm,),
            in_specs=in_specs,
            out_specs=pl.BlockSpec((tm, out_c), lambda i: (i, 0))),
        compiler_params=pltpu.CompilerParams(
            dimension_semantics=("parallel",),
            vmem_limit_bytes=_VMEM_LIMIT),
    )(*xs, *bcast)
    return out[:M] if Mp != M else out


# ---------------------------------------------------------------------------
# BatchNorm (train-mode batch stats), two-phase + fused epilogues
# ---------------------------------------------------------------------------

def _bn_stats_kernel(x_ref, s_ref):
    @pl.when(pl.program_id(0) == 0)
    def _():
        s_ref[...] = jnp.zeros_like(s_ref)
    x = x_ref[...].astype(jnp.float32)
    s_ref[0:1, :] += jnp.sum(x, axis=0, keepdims=True)
    s_ref[1:2, :] += jnp.sum(x * x, axis=0, keepdims=True)


def _bn_stats_call(x2d):
    M, C = x2d.shape
    tm, Mp = _pick_rows(M, C * jnp.dtype(x2d.dtype).itemsize, budget=1 << 20)
    xs = jnp.pad(x2d, ((0, Mp - M), (0, 0))) if Mp != M else x2d
    return pl.pallas_call(
        _bn_stats_kernel,
        out_shape=jax.ShapeDtypeStruct((2, C), jnp.float32),
        grid_spec=pltpu.PrefetchScalarGridSpec(
            num_scalar_prefetch=0,
            grid=(Mp // tm,),
            in_specs=[pl.BlockSpec((tm, C), lambda i: (i, 0))],
            out_specs=pl.BlockSpec((2, C), lambda i: (0, 0))),
        compiler_params=pltpu.CompilerParams(
            dimension_semantics=("arbitrary",),
            vmem_limit_bytes=_VMEM_LIMIT),
    )(xs)


def _norm(x_f32, s_ref, g_ref, b_ref, inv_count, eps):
    mean = s_ref[0:1, :] * inv_count
    var = jnp.maximum(s_ref[1:2, :] * inv_count - mean * mean, 0.0)
    return (x_f32 - mean) * (g_ref[...] * lax.rsqrt(var + eps)) + b_ref[...]


def _bn_act_kernel(x_ref, s_ref, g_ref, b_ref, o_ref, *, inv_count, eps, relu):
    y = _norm(x_ref[...].astype(jnp.float32), s_ref, g_ref, b_ref, inv_count, eps)
    if relu:
        y = jnp.maximum(y, 0.0)
    o_ref[...] = y.astype(o_ref.dtype)


def _bn_add_relu_kernel(x_ref, r_ref, s_ref, g_ref, b_ref, o_ref, *, inv_count, eps):
    y = _norm(x_ref[...].astype(jnp.float32), s_ref, g_ref, b_ref, inv_count, eps)
    y = y + r_ref[...].astype(jnp.float32)
    o_ref[...] = jnp.maximum(y, 0.0).astype(o_ref.dtype)


def _bn2_add_relu_kernel(x_ref, r_ref, sx_ref, gx_ref, bx_ref,
                         sr_ref, gr_ref, br_ref, o_ref, *, inv_count, eps):
    y = _norm(x_ref[...].astype(jnp.float32), sx_ref, gx_ref, bx_ref, inv_count, eps)
    y = y + _norm(r_ref[...].astype(jnp.float32), sr_ref, gr_ref, br_ref, inv_count, eps)
    o_ref[...] = jnp.maximum(y, 0.0).astype(o_ref.dtype)


def bn_act(x_nhwc, gamma, beta, relu=True, eps=1e-5):
    N, H, W, C = x_nhwc.shape
    M = N * H * W
    x2 = x_nhwc.reshape(M, C)
    stats = _bn_stats_call(x2)
    kern = functools.partial(_bn_act_kernel, inv_count=1.0 / M, eps=eps, relu=relu)
    y = _row_tiled(kern, [x2],
                   [stats, gamma.reshape(1, C).astype(jnp.float32),
                    beta.reshape(1, C).astype(jnp.float32)], jnp.bfloat16, C)
    return y.reshape(N, H, W, C)


def bn_add_relu(x_nhwc, gamma, beta, res_nhwc, eps=1e-5):
    N, H, W, C = x_nhwc.shape
    M = N * H * W
    x2, r2 = x_nhwc.reshape(M, C), res_nhwc.reshape(M, C)
    stats = _bn_stats_call(x2)
    kern = functools.partial(_bn_add_relu_kernel, inv_count=1.0 / M, eps=eps)
    y = _row_tiled(kern, [x2, r2],
                   [stats, gamma.reshape(1, C).astype(jnp.float32),
                    beta.reshape(1, C).astype(jnp.float32)], jnp.bfloat16, C)
    return y.reshape(N, H, W, C)


def bn2_add_relu(x_nhwc, gx, bx, res_nhwc, gr, br, eps=1e-5):
    N, H, W, C = x_nhwc.shape
    M = N * H * W
    x2, r2 = x_nhwc.reshape(M, C), res_nhwc.reshape(M, C)
    sx, sr = _bn_stats_call(x2), _bn_stats_call(r2)
    kern = functools.partial(_bn2_add_relu_kernel, inv_count=1.0 / M, eps=eps)
    y = _row_tiled(kern, [x2, r2],
                   [sx, gx.reshape(1, C).astype(jnp.float32), bx.reshape(1, C).astype(jnp.float32),
                    sr, gr.reshape(1, C).astype(jnp.float32), br.reshape(1, C).astype(jnp.float32)],
                   jnp.bfloat16, C)
    return y.reshape(N, H, W, C)


# ---------------------------------------------------------------------------
# MaxPool 3x3 / stride 2 / pad 1 : 9 shifted taps as pipelined inputs
# ---------------------------------------------------------------------------

def _make_max_kernel(kk):
    def kernel(*refs):
        o_ref = refs[kk]
        m = refs[0][...]
        for t in range(1, kk):
            m = jnp.maximum(m, refs[t][...])
        o_ref[...] = m
    return kernel


def maxpool_3x3_s2(x_nhwc):
    N, H, W, C = x_nhwc.shape
    pad, k, s = 1, 3, 2
    Ho = (H + 2 * pad - k) // s + 1
    Wo = (W + 2 * pad - k) // s + 1
    xp = jnp.pad(x_nhwc, ((0, 0), (pad, pad), (pad, pad), (0, 0)),
                 constant_values=-jnp.inf)
    taps = []
    for dy in range(k):
        for dx in range(k):
            sl = lax.slice(xp, (0, dy, dx, 0),
                           (N, dy + s * (Ho - 1) + 1, dx + s * (Wo - 1) + 1, C),
                           (1, s, s, 1))
            taps.append(sl.reshape(N * Ho * Wo, C))
    y = _row_tiled(_make_max_kernel(len(taps)), taps, [], x_nhwc.dtype, C)
    return y.reshape(N, Ho, Wo, C)


# ---------------------------------------------------------------------------
# Bilinear x6 upsample (align_corners=False) as one lane-dense matmul
# ---------------------------------------------------------------------------

def _bilinear_matrix(n_in, n_out):
    i = jnp.arange(n_out, dtype=jnp.float32)
    src = jnp.maximum((i + 0.5) * (float(n_in) / float(n_out)) - 0.5, 0.0)
    i0 = jnp.clip(jnp.floor(src).astype(jnp.int32), 0, n_in - 1)
    i1 = jnp.clip(i0 + 1, 0, n_in - 1)
    w1 = jnp.clip(src - i0.astype(jnp.float32), 0.0, 1.0)
    rows = jnp.arange(n_out)
    A = jnp.zeros((n_out, n_in), jnp.float32)
    A = A.at[rows, i0].add(1.0 - w1)
    A = A.at[rows, i1].add(w1)
    return A


def upsample_bilinear_x6(head_nhwc):
    N, Hs, Ws, Cc = head_nhwc.shape
    Ho, Wo = Hs * 6, Ws * 6
    A2T = jnp.kron(_bilinear_matrix(Hs, Ho), _bilinear_matrix(Ws, Wo)).T  # [Hs*Ws, Ho*Wo]
    xf = head_nhwc.transpose(0, 3, 1, 2).reshape(N * Cc, Hs * Ws)         # tiny glue
    up = pallas_matmul(xf.astype(jnp.float32), A2T, out_dtype=jnp.float32)
    return up.reshape(N, Cc, Ho, Wo)                                      # NCHW


# ---------------------------------------------------------------------------
# ResNet-50 backbone + keypoint head
# ---------------------------------------------------------------------------

def _conv_w(key, kh, kw, cin, cout):
    std = (2.0 / (kh * kw * cin)) ** 0.5
    return (std * jax.random.normal(key, (kh, kw, cin, cout), jnp.float32)).astype(jnp.bfloat16)


def init_params(key, num_keypoints=17):
    counter = [0]

    def nk():
        counter[0] += 1
        return jax.random.fold_in(key, counter[0])

    def make_block(cin, mid, has_down):
        p = {
            "w1": _conv_w(nk(), 1, 1, cin, mid),
            "g1": jnp.ones((mid,), jnp.float32), "b1": jnp.zeros((mid,), jnp.float32),
            "w2": _conv_w(nk(), 3, 3, mid, mid),
            "g2": jnp.ones((mid,), jnp.float32), "b2": jnp.zeros((mid,), jnp.float32),
            "w3": _conv_w(nk(), 1, 1, mid, mid * 4),
            "g3": jnp.ones((mid * 4,), jnp.float32), "b3": jnp.zeros((mid * 4,), jnp.float32),
        }
        if has_down:
            p["wd"] = _conv_w(nk(), 1, 1, cin, mid * 4)
            p["gd"] = jnp.ones((mid * 4,), jnp.float32)
            p["bd"] = jnp.zeros((mid * 4,), jnp.float32)
        return p

    params = {
        "stem_w": _conv_w(nk(), 7, 7, 3, 64),
        "stem_g": jnp.ones((64,), jnp.float32),
        "stem_b": jnp.zeros((64,), jnp.float32),
    }
    layer_cfg = [(64, 3, 1), (128, 4, 2), (256, 6, 2), (512, 3, 2)]
    cin = 64
    layers = []
    for mid, nblocks, stride in layer_cfg:
        blocks = [make_block(cin if i == 0 else mid * 4, mid, i == 0)
                  for i in range(nblocks)]
        layers.append({"stride": stride, "blocks": blocks})
        cin = mid * 4
    params["layers"] = layers
    params["head_w"] = _conv_w(nk(), 1, 1, 2048, num_keypoints)
    params["head_b"] = 0.01 * jax.random.normal(nk(), (num_keypoints,), jnp.float32)
    return params


def bottleneck(x, p, stride):
    out = conv2d_nhwc(x, p["w1"])
    out = bn_act(out, p["g1"], p["b1"], relu=True)
    out = conv2d_nhwc(out, p["w2"], stride=stride, pad=1)
    out = bn_act(out, p["g2"], p["b2"], relu=True)
    out = conv2d_nhwc(out, p["w3"])
    if "wd" in p:
        idn = conv2d_nhwc(x, p["wd"], stride=stride)
        return bn2_add_relu(out, p["g3"], p["b3"], idn, p["gd"], p["bd"])
    return bn_add_relu(out, p["g3"], p["b3"], x)


def keypoint_model_forward(x_nchw, params):
    """x_nchw: [N, 3, H, W] -> [N, num_keypoints, 6*(H//32), 6*(W//32)] (f32, NCHW)."""
    x = x_nchw.transpose(0, 2, 3, 1).astype(jnp.bfloat16)              # NCHW -> NHWC
    # stem: conv7x7/s2 -> BN -> ReLU -> maxpool3x3/s2
    x = conv2d_nhwc(x, params["stem_w"], stride=2, pad=3)
    x = bn_act(x, params["stem_g"], params["stem_b"], relu=True)
    x = maxpool_3x3_s2(x)
    # layer1..layer4
    for layer in params["layers"]:
        for i, bp in enumerate(layer["blocks"]):
            x = bottleneck(x, bp, stride=layer["stride"] if i == 0 else 1)
    # keypoint head: 1x1 conv with bias (f32 output)
    x = conv2d_nhwc(x, params["head_w"], out_dtype=jnp.float32)
    x = x + params["head_b"].reshape(1, 1, 1, -1)                       # tiny bias glue
    # bilinear upsample, scale_factor=6, align_corners=False
    return upsample_bilinear_x6(x)
    # TODO(synk): BatchNorm uses per-batch statistics (train-mode module); running-stat
    # tracking has no effect on this forward pass and is not implemented.


# ---------------------------------------------------------------------------

if __name__ == "__main__":
    key = jax.random.PRNGKey(0)
    params = init_params(jax.random.fold_in(key, 1), num_keypoints=17)
    # ResNet-50 needs 3 input channels; spatial/32 must be >= 1
    x = jax.random.normal(jax.random.fold_in(key, 2), (2, 3, 64, 64), jnp.float32)
    out = keypoint_model_forward(x, params)
    out = jax.block_until_ready(out)
    assert out.shape == (2, 17, 12, 12), out.shape
    assert bool(jnp.all(jnp.isfinite(out)))
    print("KERNEL_OK")
</pallas_src>

<mosaic_0001>
module attributes {stable_mosaic.version = 11 : i64} {
  func.func @_matmul_kernel(%arg0: i32, %arg1: i32, %arg2: memref<1024x147xbf16, #tpu.memory_space<vmem>>, %arg3: memref<147x64xbf16, #tpu.memory_space<vmem>>, %arg4: memref<1024x64xbf16, #tpu.memory_space<vmem>>) attributes {dimension_semantics = [#tpu.dimension_semantics<parallel>, #tpu.dimension_semantics<parallel>], iteration_bounds = array<i64: 2, 1>, scalar_prefetch = 0 : i64, scratch_operands = 0 : i64, tpu.core_type = #tpu.core_type<tc>, window_params = [{transform_indices = @transform_0, window_bounds = array<i64: 1024, 147>}, {transform_indices = @transform_1, window_bounds = array<i64: 147, 64>}, {transform_indices = @transform_2, window_bounds = array<i64: 1024, 64>}]} {
    %c0 = arith.constant 0 : index
    %c0_0 = arith.constant 0 : index
    %0 = vector.load %arg2[%c0, %c0_0] : memref<1024x147xbf16, #tpu.memory_space<vmem>>, vector<1024x147xbf16>
    %c0_1 = arith.constant 0 : index
    %c0_2 = arith.constant 0 : index
    %1 = vector.load %arg3[%c0_1, %c0_2] : memref<147x64xbf16, #tpu.memory_space<vmem>>, vector<147x64xbf16>
    %cst = arith.constant dense<0.000000e+00> : vector<1024x64xf32>
    %2 = tpu.matmul %0, %1, %cst {dimension_numbers = #tpu.dot_dimension_numbers<[1], [0], [0], [1], [0, 0, 1, 1], [], []>} : vector<1024x147xbf16>, vector<147x64xbf16>, vector<1024x64xf32> -> vector<1024x64xf32>
    %3 = arith.truncf %2 : vector<1024x64xf32> to vector<1024x64xbf16>
    %c0_3 = arith.constant 0 : index
    %c0_4 = arith.constant 0 : index
    %4 = vector.load %arg4[%c0_3, %c0_4] : memref<1024x64xbf16, #tpu.memory_space<vmem>>, vector<1024x64xbf16>
    tpu.vector_store %arg4[%c0_3, %c0_4], %3 {strides = array<i32>} : memref<1024x64xbf16, #tpu.memory_space<vmem>>, vector<1024x64xbf16>,
    return
  }
  func.func @transform_0(%arg0: i32, %arg1: i32) -> (i32, i32) {
    %c0_i32 = arith.constant 0 : i32
    %c0_i32_0 = arith.constant 0 : i32
    return %arg0, %c0_i32 : i32, i32
  }
  func.func @transform_1(%arg0: i32, %arg1: i32) -> (i32, i32) {
    %c0_i32 = arith.constant 0 : i32
    %c0_i32_0 = arith.constant 0 : i32
    return %c0_i32, %arg1 : i32, i32
  }
  func.func @transform_2(%arg0: i32, %arg1: i32) -> (i32, i32) {
    %c0_i32 = arith.constant 0 : i32
    return %arg0, %arg1 : i32, i32
  }
}

</mosaic_0001>

<llo_original>
// kernel: tpu_custom_call.1
$region0: #{tpu_custom_call.1}
  #allocation0 [shape = 'u32[]', space=smem, size = 0x4, offset = 0x4, fixed_abs, tag = 'smem constant byte address 0x4 - core index']
  #allocation1 [shape = 'u32[72,128]{1,0:T(1,128)}', space=vmem, size = 0x9000, scoped, tag = 'internal scratch']
  %s0 = inlined_call_operand.vmem [shape: bf16[2048,147], index: 0, kind: input, shape index: {}]
  %s1 = inlined_call_operand.vmem [shape: bf16[147,64], index: 1, kind: input, shape index: {}]
  %s2 = inlined_call_operand.vmem [shape: bf16[2048,64], index: 2, kind: output, shape index: {}]
  %s3 = sld [smem:[#allocation0]]
  $region41: #{tpu_custom_call.1} parent=0
    _
  %s5 = ssub.s32 1, %s3
  %s6 = scalar_select 0, %s5, %s3
  loop: start=0, step=1, limit=4
  $region2: #{tpu_custom_call.1} parent=0 // loop_pre_header
    _
  $region3: #{tpu_custom_call.1} parent=0 // loop_header
    %s8 = sphi 0, %s12
    %p9 = scmp.ge.s32.totalorder %s8, 4
    %s15 = sphi 0, %s27
    %s16 = sphi 0, %s23
    %s17 = sphi 0, %s15
    %s18 = sphi 0, %s16
    %s19 = sphi 0, %s17
    %s20 = sphi 0, %s18
    %s30 = sphi 0, %s32
    %s33 = sphi 0, %s30
    %s34 = sphi 0, %s33
    %s50 = sphi 0, %s34
    %s56 = sphi 0, %s58
    %s59 = sphi 0, %s56
    %s60 = sphi 0, %s59
    %s76 = sphi 0, %s60
    %s84 = sphi 0, %s86
    %s87 = sphi 0, %s84
    %s88 = sphi 0, %s87
    %s104 = sphi 0, %s88
  $region4: #{tpu_custom_call.1} parent=0 // loop_header_branch
    %11 = sbr.rel (%p9) target = $region8
  $region5: #{tpu_custom_call.1} parent=0 // loop_body
    %s13 = ssub.s32 %s8, 1
    %s14 = ssub.s32 %s8, 2
    %s21 = sadd.s32 1, %s16
    %p22 = scmp.ge.s32.totalorder %s21, 1
    %s23 = scalar_select %p22, 0, %s21
    %s24 = sadd.s32 1, %s15
    %s25 = scalar_select %p22, %s24, %s15
    %p26 = scmp.ge.s32.totalorder %s25, 2
    %s27 = scalar_select %p26, 0, %s25
    %s28 = ssub.s32 %s15, %s27
    %p29 = scmp.eq.s32.totalorder %s28, 0
    %s31 = sadd.s32 %s30, 1
    %s32 = scalar_select %p29, %s30, %s31
    %p35 = pneg %p29
    %p36 = scmp.eq.s32.totalorder %s8, 1
    %p37 = por %p35, %p36
    %p38 = scmp.ne.s32.totalorder %s30, %s33
    %p39 = scmp.eq.s32.totalorder %s8, 0
    %p40 = por %p38, %p39
    %p41 = scmp.ne.s32.totalorder %s30, %s33
    %p42 = scmp.eq.s32.totalorder %s13, 1
    %p43 = por %p41, %p42
    %p44 = scmp.ne.s32.totalorder %s33, %s34
    %p45 = scmp.eq.s32.totalorder %s13, 0
    %p46 = por %p44, %p45
    %p47 = scmp.ne.s32.totalorder %s33, %s34
    %p48 = scmp.eq.s32.totalorder %s14, 1
    %p49 = por %p47, %p48
    %p51 = scmp.ne.s32.totalorder %s34, %s50
    %p52 = scmp.eq.s32.totalorder %s14, 0
    %p53 = por %p51, %p52
    %s54 = ssub.s32 %s16, %s23
    %p55 = scmp.eq.s32.totalorder %s54, 0
    %s57 = sadd.s32 %s56, 1
    %s58 = scalar_select %p55, %s56, %s57
    %p61 = pneg %p55
    %p62 = scmp.eq.s32.totalorder %s8, 1
    %p63 = por %p61, %p62
    %p64 = scmp.ne.s32.totalorder %s56, %s59
    %p65 = scmp.eq.s32.totalorder %s8, 0
    %p66 = por %p64, %p65
    %p67 = scmp.ne.s32.totalorder %s56, %s59
    %p68 = scmp.eq.s32.totalorder %s13, 1
    %p69 = por %p67, %p68
    %p70 = scmp.ne.s32.totalorder %s59, %s60
    %p71 = scmp.eq.s32.totalorder %s13, 0
    %p72 = por %p70, %p71
    %p73 = scmp.ne.s32.totalorder %s59, %s60
    %p74 = scmp.eq.s32.totalorder %s14, 1
    %p75 = por %p73, %p74
    %p77 = scmp.ne.s32.totalorder %s60, %s76
    %p78 = scmp.eq.s32.totalorder %s14, 0
    %p79 = por %p77, %p78
    %s80 = ssub.s32 %s15, %s27
    %s81 = ssub.s32 %s16, %s23
    %s82 = sor.u32 %s80, %s81
    %p83 = scmp.eq.s32.totalorder %s82, 0
    %s85 = sadd.s32 %s84, 1
    %s86 = scalar_select %p83, %s84, %s85
    %p89 = pneg %p83
    %p90 = scmp.eq.s32.totalorder %s8, 1
    %p91 = por %p89, %p90
    %p92 = scmp.ne.s32.totalorder %s84, %s87
    %p93 = scmp.eq.s32.totalorder %s8, 0
    %p94 = por %p92, %p93
    %p95 = scmp.ne.s32.totalorder %s84, %s87
    %p96 = scmp.eq.s32.totalorder %s13, 1
    %p97 = por %p95, %p96
    %p98 = scmp.ne.s32.totalorder %s87, %s88
    %p99 = scmp.eq.s32.totalorder %s13, 0
    %p100 = por %p98, %p99
    %p101 = scmp.ne.s32.totalorder %s87, %s88
    %p102 = scmp.eq.s32.totalorder %s14, 1
    %p103 = por %p101, %p102
    %p105 = scmp.ne.s32.totalorder %s88, %s104
    %p106 = scmp.eq.s32.totalorder %s14, 0
    %p107 = por %p105, %p106
    %p108 = scmp.le.s32.totalorder 1, %s8
    %p109 = scmp.lt.s32.totalorder %s8, 3
    %p110 = pnand %p108, %p109
    %p111 = pneg %p110
    // Predicated region
    $region9: #{tpu_custom_call.1} parent=5 // pred_check
      _
    $region10: #{tpu_custom_call.1} parent=5 // pred_check_branch
      %113 = sbr.rel (%p110) target = $region12
    $region11: #{tpu_custom_call.1} parent=5 // pred_region
      %s114 = ssub.s32 %s8, 1
      // Predicated region
      $region13: #{tpu_custom_call.1} parent=11 // pred_check
        %p115 = pneg %p72
      $region14: #{tpu_custom_call.1} parent=11 // pred_check_branch
        %117 = sbr.rel (%p115) target = $region16
      $region15: #{tpu_custom_call.1} parent=11 // pred_region
        %p118 = scmp.lt.s32.totalorder %s18, 0
        %s119 = scalar_select %p118, %s18, 0
        %s120 = smul.addr %s119, 4
        %s121 = scalar_lea.vmem %s1, %s120
      $region16: #{tpu_custom_call.1} parent=11 // pred_fallthru
        _
    $region12: #{tpu_custom_call.1} parent=5 // pred_fallthru
      _
    %p122 = scmp.lt.s32.totalorder %s8, 2
    // Predicated region
    $region17: #{tpu_custom_call.1} parent=5 // pred_check
      %p123 = pneg %p122
    $region18: #{tpu_custom_call.1} parent=5 // pred_check_branch
      %125 = sbr.rel (%p123) target = $region20
    $region19: #{tpu_custom_call.1} parent=5 // pred_region
      // Predicated region
      $region21: #{tpu_custom_call.1} parent=19 // pred_check
        %p126 = pneg %p40
      $region22: #{tpu_custom_call.1} parent=19 // pred_check_branch
        %128 = sbr.rel (%p126) target = $region24
      $region23: #{tpu_custom_call.1} parent=19 // pred_region
        %s129 = smul.u32 128, %s15
        %p130 = scmp.lt.s32.totalorder %s129, 255
        %s131 = scalar_select %p130, %s129, 255
        %s132 = smul.addr %s131, 2
        %s133 = smul.addr %s132, 4
        %s134 = scalar_lea.vmem %s0, %s133
        %s135 = smul.u32 128, %s15
      $region24: #{tpu_custom_call.1} parent=19 // pred_fallthru
        _
    $region20: #{tpu_custom_call.1} parent=5 // pred_fallthru
      _
    %p136 = scmp.le.s32.totalorder 1, %s8
    %p137 = scmp.lt.s32.totalorder %s8, 3
    %p138 = pnand %p136, %p137
    %p139 = pneg %p138
    // Predicated region
    $region25: #{tpu_custom_call.1} parent=5 // pred_check
      _
    $region26: #{tpu_custom_call.1} parent=5 // pred_check_branch
      %141 = sbr.rel (%p138) target = $region28
    $region27: #{tpu_custom_call.1} parent=5 // pred_region
      %s142 = ssub.s32 %s8, 1
      %s143 = smul.u32 128, %s17
      %p144 = scmp.lt.s32.totalorder %s143, 255
      %s145 = scalar_select %p144, %s143, 255
      %s146 = smul.addr %s145, 2
      %s147 = smul.addr %s146, 4
      %s148 = scalar_lea.vmem %s0, %s147
      %p149 = pneg %p46
      %p150 = pneg %p43
      %p151 = scmp.lt.s32.totalorder %s18, 0
      %s152 = scalar_select %p151, %s18, 0
      %s153 = smul.addr %s152, 4
      %s154 = scalar_lea.vmem %s1, %s153
      %p155 = pneg %p72
      %p156 = pneg %p69
      %p157 = pneg %p100
      %p158 = pneg %p97
      %s159 = smul.u32 128, %s17
      %p160 = scmp.lt.s32.totalorder %s159, 255
      %s161 = scalar_select %p160, %s159, 255
      %p162 = scmp.lt.s32.totalorder %s18, 0
      %s163 = scalar_select %p162, %s18, 0
      %s164 = sadd.s32 %s163, %s161
      %s165 = smul.addr %s164, 4
      %s166 = scalar_lea.vmem %s2, %s165
      %s167 = smul.u32 128, %s17
      %p168 = scmp.lt.s32.totalorder %s167, 255
      %s169 = scalar_select %p168, %s167, 255
      %s170 = smul.addr %s169, 2
      %s171 = smul.addr %s170, 4
      %s172 = scalar_lea.vmem %s0, %s171
      %s173 = smul.u32 128, %s17
      %p174 = scmp.lt.s32.totalorder %s18, 0
      %s175 = scalar_select %p174, %s18, 0
      %s176 = smul.addr %s175, 4
      %s177 = scalar_lea.vmem %s1, %s176
      %s178 = smul.u32 128, %s17
      %p179 = scmp.lt.s32.totalorder %s178, 255
      %s180 = scalar_select %p179, %s178, 255
      %p181 = scmp.lt.s32.totalorder %s18, 0
      %s182 = scalar_select %p181, %s18, 0
      %s183 = sadd.s32 %s182, %s180
      %s184 = smul.addr %s183, 4
      %s185 = scalar_lea.vmem %s2, %s184
      %s186 = smul.u32 128, %s17
      %v188 = vld [vmem:[%s172] sm:$0xff]
      %v189 = vld [vmem:[%s172 + $0x8] sm:$0xff]
      %v190 = vld [vmem:[%s172 + $0x10] sm:$0xff]
      %v191 = vld [vmem:[%s172 + $0x18] sm:$0xff]
      %v192 = vld [vmem:[%s172 + $0x20] sm:$0xff]
      %v193 = vld [vmem:[%s172 + $0x28] sm:$0xff]
      %v194 = vld [vmem:[%s172 + $0x30] sm:$0xff]
      %v195 = vld [vmem:[%s172 + $0x38] sm:$0xff]
      %v196 = vld [vmem:[%s172 + $0x40] sm:$0xff]
      %v197 = vld [vmem:[%s172 + $0x48] sm:$0xff]
      %v198 = vld [vmem:[%s172 + $0x50] sm:$0xff]
      %v199 = vld [vmem:[%s172 + $0x58] sm:$0xff]
      %v200 = vld [vmem:[%s172 + $0x60] sm:$0xff]
      %v201 = vld [vmem:[%s172 + $0x68] sm:$0xff]
      %v202 = vld [vmem:[%s172 + $0x70] sm:$0xff]
      %v203 = vld [vmem:[%s172 + $0x78] sm:$0xff]
      %v204 = vld [vmem:[%s172 + $0x80] sm:$0xff]
      %v205 = vld [vmem:[%s172 + $0x88] sm:$0xff]
      %v206 = vld [vmem:[%s172 + $0x90] sm:$0xff]
      %v207 = vld [vmem:[%s172 + $0x98] sm:$0xff]
      %v208 = vld [vmem:[%s172 + $0xa0] sm:$0xff]
      %v209 = vld [vmem:[%s172 + $0xa8] sm:$0xff]
      %v210 = vld [vmem:[%s172 + $0xb0] sm:$0xff]
      %v211 = vld [vmem:[%s172 + $0xb8] sm:$0xff]
      %v212 = vld [vmem:[%s172 + $0xc0] sm:$0xff]
      %v213 = vld [vmem:[%s172 + $0xc8] sm:$0xff]
      %v214 = vld [vmem:[%s172 + $0xd0] sm:$0xff]
      %v215 = vld [vmem:[%s172 + $0xd8] sm:$0xff]
      %v216 = vld [vmem:[%s172 + $0xe0] sm:$0xff]
      %v217 = vld [vmem:[%s172 + $0xe8] sm:$0xff]
      %v218 = vld [vmem:[%s172 + $0xf0] sm:$0xff]
      %v219 = vld [vmem:[%s172 + $0xf8] sm:$0xff]
      %v220 = vld [vmem:[%s172 + $0x100] sm:$0xff]
      %v221 = vld [vmem:[%s172 + $0x108] sm:$0xff]
      %v222 = vld [vmem:[%s172 + $0x110] sm:$0xff]
      %v223 = vld [vmem:[%s172 + $0x118] sm:$0xff]
      %v224 = vld [vmem:[%s172 + $0x120] sm:$0xff]
      %v225 = vld [vmem:[%s172 + $0x128] sm:$0xff]
      %v226 = vld [vmem:[%s172 + $0x130] sm:$0xff]
      %v227 = vld [vmem:[%s172 + $0x138] sm:$0xff]
      %v228 = vld [vmem:[%s172 + $0x140] sm:$0xff]
      %v229 = vld [vmem:[%s172 + $0x148] sm:$0xff]
      %v230 = vld [vmem:[%s172 + $0x150] sm:$0xff]
      %v231 = vld [vmem:[%s172 + $0x158] sm:$0xff]
      %v232 = vld [vmem:[%s172 + $0x160] sm:$0xff]
      %v233 = vld [vmem:[%s172 + $0x168] sm:$0xff]
      %v234 = vld [vmem:[%s172 + $0x170] sm:$0xff]
      %v235 = vld [vmem:[%s172 + $0x178] sm:$0xff]
      %v236 = vld [vmem:[%s172 + $0x180] sm:$0xff]
      %v237 = vld [vmem:[%s172 + $0x188] sm:$0xff]
      %v238 = vld [vmem:[%s172 + $0x190] sm:$0xff]
      %v239 = vld [vmem:[%s172 + $0x198] sm:$0xff]
      %v240 = vld [vmem:[%s172 + $0x1a0] sm:$0xff]
      %v241 = vld [vmem:[%s172 + $0x1a8] sm:$0xff]
      %v242 = vld [vmem:[%s172 + $0x1b0] sm:$0xff]
      %v243 = vld [vmem:[%s172 + $0x1b8] sm:$0xff]
      %v244 = vld [vmem:[%s172 + $0x1c0] sm:$0xff]
      %v245 = vld [vmem:[%s172 + $0x1c8] sm:$0xff]
      %v246 = vld [vmem:[%s172 + $0x1d0] sm:$0xff]
      %v247 = vld [vmem:[%s172 + $0x1d8] sm:$0xff]
      %v248 = vld [vmem:[%s172 + $0x1e0] sm:$0xff]
      %v249 = vld [vmem:[%s172 + $0x1e8] sm:$0xff]
      %v250 = vld [vmem:[%s172 + $0x1f0] sm:$0xff]
      %v251 = vld [vmem:[%s172 + $0x1f8] sm:$0xff]
      %v252 = vld [vmem:[%s172 + $0x200] sm:$0xff]
      %v253 = vld [vmem:[%s172 + $0x208] sm:$0xff]
      %v254 = vld [vmem:[%s172 + $0x210] sm:$0xff]
      %v255 = vld [vmem:[%s172 + $0x218] sm:$0xff]
      %v256 = vld [vmem:[%s172 + $0x220] sm:$0xff]
      %v257 = vld [vmem:[%s172 + $0x228] sm:$0xff]
      %v258 = vld [vmem:[%s172 + $0x230] sm:$0xff]
      %v259 = vld [vmem:[%s172 + $0x238] sm:$0xff]
      %v260 = vld [vmem:[%s172 + $0x240] sm:$0xff]
      %v261 = vld [vmem:[%s172 + $0x248] sm:$0xff]
      %v262 = vld [vmem:[%s172 + $0x250] sm:$0xff]
      %v263 = vld [vmem:[%s172 + $0x258] sm:$0xff]
      %v264 = vld [vmem:[%s172 + $0x260] sm:$0xff]
      %v265 = vld [vmem:[%s172 + $0x268] sm:$0xff]
      %v266 = vld [vmem:[%s172 + $0x270] sm:$0xff]
      %v267 = vld [vmem:[%s172 + $0x278] sm:$0xff]
      %v268 = vld [vmem:[%s172 + $0x280] sm:$0xff]
      %v269 = vld [vmem:[%s172 + $0x288] sm:$0xff]
      %v270 = vld [vmem:[%s172 + $0x290] sm:$0xff]
      %v271 = vld [vmem:[%s172 + $0x298] sm:$0xff]
      %v272 = vld [vmem:[%s172 + $0x2a0] sm:$0xff]
      %v273 = vld [vmem:[%s172 + $0x2a8] sm:$0xff]
      %v274 = vld [vmem:[%s172 + $0x2b0] sm:$0xff]
      %v275 = vld [vmem:[%s172 + $0x2b8] sm:$0xff]
      %v276 = vld [vmem:[%s172 + $0x2c0] sm:$0xff]
      %v277 = vld [vmem:[%s172 + $0x2c8] sm:$0xff]
      %v278 = vld [vmem:[%s172 + $0x2d0] sm:$0xff]
      %v279 = vld [vmem:[%s172 + $0x2d8] sm:$0xff]
      %v280 = vld [vmem:[%s172 + $0x2e0] sm:$0xff]
      %v281 = vld [vmem:[%s172 + $0x2e8] sm:$0xff]
      %v282 = vld [vmem:[%s172 + $0x2f0] sm:$0xff]
      %v283 = vld [vmem:[%s172 + $0x2f8] sm:$0xff]
      %v284 = vld [vmem:[%s172 + $0x300] sm:$0xff]
      %v285 = vld [vmem:[%s172 + $0x308] sm:$0xff]
      %v286 = vld [vmem:[%s172 + $0x310] sm:$0xff]
      %v287 = vld [vmem:[%s172 + $0x318] sm:$0xff]
      %v288 = vld [vmem:[%s172 + $0x320] sm:$0xff]
      %v289 = vld [vmem:[%s172 + $0x328] sm:$0xff]
      %v290 = vld [vmem:[%s172 + $0x330] sm:$0xff]
      %v291 = vld [vmem:[%s172 + $0x338] sm:$0xff]
      %v292 = vld [vmem:[%s172 + $0x340] sm:$0xff]
      %v293 = vld [vmem:[%s172 + $0x348] sm:$0xff]
      %v294 = vld [vmem:[%s172 + $0x350] sm:$0xff]
      %v295 = vld [vmem:[%s172 + $0x358] sm:$0xff]
      %v296 = vld [vmem:[%s172 + $0x360] sm:$0xff]
      %v297 = vld [vmem:[%s172 + $0x368] sm:$0xff]
      %v298 = vld [vmem:[%s172 + $0x370] sm:$0xff]
      %v299 = vld [vmem:[%s172 + $0x378] sm:$0xff]
      %v300 = vld [vmem:[%s172 + $0x380] sm:$0xff]
      %v301 = vld [vmem:[%s172 + $0x388] sm:$0xff]
      %v302 = vld [vmem:[%s172 + $0x390] sm:$0xff]
      %v303 = vld [vmem:[%s172 + $0x398] sm:$0xff]
      %v304 = vld [vmem:[%s172 + $0x3a0] sm:$0xff]
      %v305 = vld [vmem:[%s172 + $0x3a8] sm:$0xff]
      %v306 = vld [vmem:[%s172 + $0x3b0] sm:$0xff]
      %v307 = vld [vmem:[%s172 + $0x3b8] sm:$0xff]
      %v308 = vld [vmem:[%s172 + $0x3c0] sm:$0xff]
      %v309 = vld [vmem:[%s172 + $0x3c8] sm:$0xff]
      %v310 = vld [vmem:[%s172 + $0x3d0] sm:$0xff]
      %v311 = vld [vmem:[%s172 + $0x3d8] sm:$0xff]
      %v312 = vld [vmem:[%s172 + $0x3e0] sm:$0xff]
      %v313 = vld [vmem:[%s172 + $0x3e8] sm:$0xff]
      %v314 = vld [vmem:[%s172 + $0x3f0] sm:$0xff]
      %v315 = vld [vmem:[%s172 + $0x3f8] sm:$0xff]
      %v316 = vld [vmem:[%s177] sm:$0xf]
      %v317 = vld [vmem:[%s177 + $0x4] sm:$0xf]
      %v318 = vld [vmem:[%s177 + $0x8] sm:$0xf]
      %v319 = vld [vmem:[%s177 + $0xc] sm:$0xf]
      %v320 = vld [vmem:[%s177 + $0x10] sm:$0xf]
      %v321 = vld [vmem:[%s177 + $0x14] sm:$0xf]
      %v322 = vld [vmem:[%s177 + $0x18] sm:$0xf]
      %v323 = vld [vmem:[%s177 + $0x1c] sm:$0xf]
      %v324 = vld [vmem:[%s177 + $0x20] sm:$0xf]
      %v325 = vld [vmem:[%s177 + $0x24] sm:$0xf]
      %v326 = vld [vmem:[%s177 + $0x28] sm:$0xf]
      %v327 = vld [vmem:[%s177 + $0x2c] sm:$0xf]
      %v328 = vld [vmem:[%s177 + $0x30] sm:$0xf]
      %v329 = vld [vmem:[%s177 + $0x34] sm:$0xf]
      %v330 = vld [vmem:[%s177 + $0x38] sm:$0xf]
      %v331 = vld [vmem:[%s177 + $0x3c] sm:$0xf]
      %v332 = vld [vmem:[%s177 + $0x40] sm:$0xf]
      %v333 = vld [vmem:[%s177 + $0x44] sm:$0xf]
      %v334 = vld [vmem:[%s177 + $0x48] sm:$0x3]
      %v463 = vunpack.c.l.b16 %v188
      %v464 = vunpack.c.h.b16 %v188
      %v465 = vunpack.c.l.b16 %v189
      %v466 = vunpack.c.h.b16 %v189
      %v467 = vunpack.c.l.b16 %v190
      %v468 = vunpack.c.h.b16 %v190
      %v469 = vunpack.c.l.b16 %v191
      %v470 = vunpack.c.h.b16 %v191
      %v471 = vunpack.c.l.b16 %v192
      %v472 = vunpack.c.h.b16 %v192
      %v473 = vunpack.c.l.b16 %v193
      %v474 = vunpack.c.h.b16 %v193
      %v475 = vunpack.c.l.b16 %v194
      %v476 = vunpack.c.h.b16 %v194
      %v477 = vunpack.c.l.b16 %v195
      %v478 = vunpack.c.h.b16 %v195
      %v479 = vunpack.c.l.b16 %v196
      %v480 = vunpack.c.h.b16 %v196
      %v481 = vunpack.c.l.b16 %v197
      %v482 = vunpack.c.h.b16 %v197
      %v483 = vunpack.c.l.b16 %v198
      %v484 = vunpack.c.h.b16 %v198
      %v485 = vunpack.c.l.b16 %v199
      %v486 = vunpack.c.h.b16 %v199
      %v487 = vunpack.c.l.b16 %v200
      %v488 = vunpack.c.h.b16 %v200
      %v489 = vunpack.c.l.b16 %v201
      %v490 = vunpack.c.h.b16 %v201
      %v491 = vunpack.c.l.b16 %v202
      %v492 = vunpack.c.h.b16 %v202
      %v493 = vunpack.c.l.b16 %v203
      %v494 = vunpack.c.h.b16 %v203
      %v495 = vunpack.c.l.b16 %v204
      %v496 = vunpack.c.h.b16 %v204
      %v497 = vunpack.c.l.b16 %v205
      %v498 = vunpack.c.h.b16 %v205
      %v499 = vunpack.c.l.b16 %v206
      %v500 = vunpack.c.h.b16 %v206
      %v501 = vunpack.c.l.b16 %v207
      %v502 = vunpack.c.h.b16 %v207
      %v503 = vunpack.c.l.b16 %v208
      %v504 = vunpack.c.h.b16 %v208
      %v505 = vunpack.c.l.b16 %v209
      %v506 = vunpack.c.h.b16 %v209
      %v507 = vunpack.c.l.b16 %v210
      %v508 = vunpack.c.h.b16 %v210
      %v509 = vunpack.c.l.b16 %v211
      %v510 = vunpack.c.h.b16 %v211
      %v511 = vunpack.c.l.b16 %v212
      %v512 = vunpack.c.h.b16 %v212
      %v513 = vunpack.c.l.b16 %v213
      %v514 = vunpack.c.h.b16 %v213
      %v515 = vunpack.c.l.b16 %v214
      %v516 = vunpack.c.h.b16 %v214
      %v517 = vunpack.c.l.b16 %v215
      %v518 = vunpack.c.h.b16 %v215
      %v519 = vunpack.c.l.b16 %v216
      %v520 = vunpack.c.h.b16 %v216
      %v521 = vunpack.c.l.b16 %v217
      %v522 = vunpack.c.h.b16 %v217
      %v523 = vunpack.c.l.b16 %v218
      %v524 = vunpack.c.h.b16 %v218
      %v525 = vunpack.c.l.b16 %v219
      %v526 = vunpack.c.h.b16 %v219
      %v527 = vunpack.c.l.b16 %v220
      %v528 = vunpack.c.h.b16 %v220
      %v529 = vunpack.c.l.b16 %v221
      %v530 = vunpack.c.h.b16 %v221
      %v531 = vunpack.c.l.b16 %v222
      %v532 = vunpack.c.h.b16 %v222
      %v533 = vunpack.c.l.b16 %v223
      %v534 = vunpack.c.h.b16 %v223
      %v535 = vunpack.c.l.b16 %v224
      %v536 = vunpack.c.h.b16 %v224
      %v537 = vunpack.c.l.b16 %v225
      %v538 = vunpack.c.h.b16 %v225
      %v539 = vunpack.c.l.b16 %v226
      %v540 = vunpack.c.h.b16 %v226
      %v541 = vunpack.c.l.b16 %v227
      %v542 = vunpack.c.h.b16 %v227
      %v543 = vunpack.c.l.b16 %v228
      %v544 = vunpack.c.h.b16 %v228
      %v545 = vunpack.c.l.b16 %v229
      %v546 = vunpack.c.h.b16 %v229
      %v547 = vunpack.c.l.b16 %v230
      %v548 = vunpack.c.h.b16 %v230
      %v549 = vunpack.c.l.b16 %v231
      %v550 = vunpack.c.h.b16 %v231
      %v551 = vunpack.c.l.b16 %v232
      %v552 = vunpack.c.h.b16 %v232
      %v553 = vunpack.c.l.b16 %v233
      %v554 = vunpack.c.h.b16 %v233
      %v555 = vunpack.c.l.b16 %v234
      %v556 = vunpack.c.h.b16 %v234
      %v557 = vunpack.c.l.b16 %v235
      %v558 = vunpack.c.h.b16 %v235
      %v559 = vunpack.c.l.b16 %v236
      %v560 = vunpack.c.h.b16 %v236
      %v561 = vunpack.c.l.b16 %v237
      %v562 = vunpack.c.h.b16 %v237
      %v563 = vunpack.c.l.b16 %v238
      %v564 = vunpack.c.h.b16 %v238
      %v565 = vunpack.c.l.b16 %v239
      %v566 = vunpack.c.h.b16 %v239
      %v567 = vunpack.c.l.b16 %v240
      %v568 = vunpack.c.h.b16 %v240
      %v569 = vunpack.c.l.b16 %v241
      %v570 = vunpack.c.h.b16 %v241
      %v571 = vunpack.c.l.b16 %v242
      %v572 = vunpack.c.h.b16 %v242
      %v573 = vunpack.c.l.b16 %v243
      %v574 = vunpack.c.h.b16 %v243
      %v575 = vunpack.c.l.b16 %v244
      %v576 = vunpack.c.h.b16 %v244
      %v577 = vunpack.c.l.b16 %v245
      %v578 = vunpack.c.h.b16 %v245
      %v579 = vunpack.c.l.b16 %v246
      %v580 = vunpack.c.h.b16 %v246
      %v581 = vunpack.c.l.b16 %v247
      %v582 = vunpack.c.h.b16 %v247
      %v583 = vunpack.c.l.b16 %v248
      %v584 = vunpack.c.h.b16 %v248
      %v585 = vunpack.c.l.b16 %v249
      %v586 = vunpack.c.h.b16 %v249
      %v587 = vunpack.c.l.b16 %v250
      %v588 = vunpack.c.h.b16 %v250
      %v589 = vunpack.c.l.b16 %v251
      %v590 = vunpack.c.h.b16 %v251
      %v591 = vunpack.c.l.b16 %v252
      %v592 = vunpack.c.h.b16 %v252
      %v593 = vunpack.c.l.b16 %v253
      %v594 = vunpack.c.h.b16 %v253
      %v595 = vunpack.c.l.b16 %v254
      %v596 = vunpack.c.h.b16 %v254
      %v597 = vunpack.c.l.b16 %v255
      %v598 = vunpack.c.h.b16 %v255
      %v599 = vunpack.c.l.b16 %v256
      %v600 = vunpack.c.h.b16 %v256
      %v601 = vunpack.c.l.b16 %v257
      %v602 = vunpack.c.h.b16 %v257
      %v603 = vunpack.c.l.b16 %v258
      %v604 = vunpack.c.h.b16 %v258
      %v605 = vunpack.c.l.b16 %v259
      %v606 = vunpack.c.h.b16 %v259
      %v607 = vunpack.c.l.b16 %v260
      %v608 = vunpack.c.h.b16 %v260
      %v609 = vunpack.c.l.b16 %v261
      %v610 = vunpack.c.h.b16 %v261
      %v611 = vunpack.c.l.b16 %v262
      %v612 = vunpack.c.h.b16 %v262
      %v613 = vunpack.c.l.b16 %v263
      %v614 = vunpack.c.h.b16 %v263
      %v615 = vunpack.c.l.b16 %v264
      %v616 = vunpack.c.h.b16 %v264
      %v617 = vunpack.c.l.b16 %v265
      %v618 = vunpack.c.h.b16 %v265
      %v619 = vunpack.c.l.b16 %v266
      %v620 = vunpack.c.h.b16 %v266
      %v621 = vunpack.c.l.b16 %v267
      %v622 = vunpack.c.h.b16 %v267
      %v623 = vunpack.c.l.b16 %v268
      %v624 = vunpack.c.h.b16 %v268
      %v625 = vunpack.c.l.b16 %v269
      %v626 = vunpack.c.h.b16 %v269
      %v627 = vunpack.c.l.b16 %v270
      %v628 = vunpack.c.h.b16 %v270
      %v629 = vunpack.c.l.b16 %v271
      %v630 = vunpack.c.h.b16 %v271
      %v631 = vunpack.c.l.b16 %v272
      %v632 = vunpack.c.h.b16 %v272
      %v633 = vunpack.c.l.b16 %v273
      %v634 = vunpack.c.h.b16 %v273
      %v635 = vunpack.c.l.b16 %v274
      %v636 = vunpack.c.h.b16 %v274
      %v637 = vunpack.c.l.b16 %v275
      %v638 = vunpack.c.h.b16 %v275
      %v639 = vunpack.c.l.b16 %v276
      %v640 = vunpack.c.h.b16 %v276
      %v641 = vunpack.c.l.b16 %v277
      %v642 = vunpack.c.h.b16 %v277
      %v643 = vunpack.c.l.b16 %v278
      %v644 = vunpack.c.h.b16 %v278
      %v645 = vunpack.c.l.b16 %v279
      %v646 = vunpack.c.h.b16 %v279
      %v647 = vunpack.c.l.b16 %v280
      %v648 = vunpack.c.h.b16 %v280
      %v649 = vunpack.c.l.b16 %v281
      %v650 = vunpack.c.h.b16 %v281
      %v651 = vunpack.c.l.b16 %v282
      %v652 = vunpack.c.h.b16 %v282
      %v653 = vunpack.c.l.b16 %v283
      %v654 = vunpack.c.h.b16 %v283
      %v655 = vunpack.c.l.b16 %v284
      %v656 = vunpack.c.h.b16 %v284
      %v657 = vunpack.c.l.b16 %v285
      %v658 = vunpack.c.h.b16 %v285
      %v659 = vunpack.c.l.b16 %v286
      %v660 = vunpack.c.h.b16 %v286
      %v661 = vunpack.c.l.b16 %v287
      %v662 = vunpack.c.h.b16 %v287
      %v663 = vunpack.c.l.b16 %v288
      %v664 = vunpack.c.h.b16 %v288
      %v665 = vunpack.c.l.b16 %v289
      %v666 = vunpack.c.h.b16 %v289
      %v667 = vunpack.c.l.b16 %v290
      %v668 = vunpack.c.h.b16 %v290
      %v669 = vunpack.c.l.b16 %v291
      %v670 = vunpack.c.h.b16 %v291
      %v671 = vunpack.c.l.b16 %v292
      %v672 = vunpack.c.h.b16 %v292
      %v673 = vunpack.c.l.b16 %v293
      %v674 = vunpack.c.h.b16 %v293
      %v675 = vunpack.c.l.b16 %v294
      %v676 = vunpack.c.h.b16 %v294
      %v677 = vunpack.c.l.b16 %v295
      %v678 = vunpack.c.h.b16 %v295
      %v679 = vunpack.c.l.b16 %v296
      %v680 = vunpack.c.h.b16 %v296
      %v681 = vunpack.c.l.b16 %v297
      %v682 = vunpack.c.h.b16 %v297
      %v683 = vunpack.c.l.b16 %v298
      %v684 = vunpack.c.h.b16 %v298
      %v685 = vunpack.c.l.b16 %v299
      %v686 = vunpack.c.h.b16 %v299
      %v687 = vunpack.c.l.b16 %v300
      %v688 = vunpack.c.h.b16 %v300
      %v689 = vunpack.c.l.b16 %v301
      %v690 = vunpack.c.h.b16 %v301
      %v691 = vunpack.c.l.b16 %v302
      %v692 = vunpack.c.h.b16 %v302
      %v693 = vunpack.c.l.b16 %v303
      %v694 = vunpack.c.h.b16 %v303
      %v695 = vunpack.c.l.b16 %v304
      %v696 = vunpack.c.h.b16 %v304
      %v697 = vunpack.c.l.b16 %v305
      %v698 = vunpack.c.h.b16 %v305
      %v699 = vunpack.c.l.b16 %v306
      %v700 = vunpack.c.h.b16 %v306
      %v701 = vunpack.c.l.b16 %v307
      %v702 = vunpack.c.h.b16 %v307
      %v703 = vunpack.c.l.b16 %v308
      %v704 = vunpack.c.h.b16 %v308
      %v705 = vunpack.c.l.b16 %v309
      %v706 = vunpack.c.h.b16 %v309
      %v707 = vunpack.c.l.b16 %v310
      %v708 = vunpack.c.h.b16 %v310
      %v709 = vunpack.c.l.b16 %v311
      %v710 = vunpack.c.h.b16 %v311
      %v711 = vunpack.c.l.b16 %v312
      %v712 = vunpack.c.h.b16 %v312
      %v713 = vunpack.c.l.b16 %v313
      %v714 = vunpack.c.h.b16 %v313
      %v715 = vunpack.c.l.b16 %v314
      %v716 = vunpack.c.h.b16 %v314
      %v717 = vunpack.c.l.b16 %v315
      %v718 = vunpack.c.h.b16 %v315
      %v719 = vpack.c.b16 %v465, %v463
      %v720 = vpack.c.b16 %v466, %v464
      %v721 = vpack.c.b16 %v469, %v467
      %v722 = vpack.c.b16 %v470, %v468
      %v723 = vpack.c.b16 %v473, %v471
      %v724 = vpack.c.b16 %v474, %v472
      %v725 = vpack.c.b16 %v477, %v475
      %v726 = vpack.c.b16 %v478, %v476
      %v727 = vpack.c.b16 %v481, %v479
      %v728 = vpack.c.b16 %v482, %v480
      %v729 = vpack.c.b16 %v485, %v483
      %v730 = vpack.c.b16 %v486, %v484
      %v731 = vpack.c.b16 %v489, %v487
      %v732 = vpack.c.b16 %v490, %v488
      %v733 = vpack.c.b16 %v493, %v491
      %v734 = vpack.c.b16 %v494, %v492
      %v735 = vpack.c.b16 %v497, %v495
      %v736 = vpack.c.b16 %v498, %v496
      %v737 = vpack.c.b16 %v501, %v499
      %v738 = vpack.c.b16 %v502, %v500
      %v739 = vpack.c.b16 %v505, %v503
      %v740 = vpack.c.b16 %v506, %v504
      %v741 = vpack.c.b16 %v509, %v507
      %v742 = vpack.c.b16 %v510, %v508
      %v743 = vpack.c.b16 %v513, %v511
      %v744 = vpack.c.b16 %v514, %v512
      %v745 = vpack.c.b16 %v517, %v515
      %v746 = vpack.c.b16 %v518, %v516
      %v747 = vpack.c.b16 %v521, %v519
      %v748 = vpack.c.b16 %v522, %v520
      %v749 = vpack.c.b16 %v525, %v523
      %v750 = vpack.c.b16 %v526, %v524
      %v751 = vpack.c.b16 %v529, %v527
      %v752 = vpack.c.b16 %v530, %v528
      %v753 = vpack.c.b16 %v533, %v531
      %v754 = vpack.c.b16 %v534, %v532
      %v755 = vpack.c.b16 %v537, %v535
      %v756 = vpack.c.b16 %v538, %v536
      %v757 = vpack.c.b16 %v541, %v539
      %v758 = vpack.c.b16 %v542, %v540
      %v759 = vpack.c.b16 %v545, %v543
      %v760 = vpack.c.b16 %v546, %v544
      %v761 = vpack.c.b16 %v549, %v547
      %v762 = vpack.c.b16 %v550, %v548
      %v763 = vpack.c.b16 %v553, %v551
      %v764 = vpack.c.b16 %v554, %v552
      %v765 = vpack.c.b16 %v557, %v555
      %v766 = vpack.c.b16 %v558, %v556
      %v767 = vpack.c.b16 %v561, %v559
      %v768 = vpack.c.b16 %v562, %v560
      %v769 = vpack.c.b16 %v565, %v563
      %v770 = vpack.c.b16 %v566, %v564
      %v771 = vpack.c.b16 %v569, %v567
      %v772 = vpack.c.b16 %v570, %v568
      %v773 = vpack.c.b16 %v573, %v571
      %v774 = vpack.c.b16 %v574, %v572
      %v775 = vpack.c.b16 %v577, %v575
      %v776 = vpack.c.b16 %v578, %v576
      %v777 = vpack.c.b16 %v581, %v579
      %v778 = vpack.c.b16 %v582, %v580
      %v779 = vpack.c.b16 %v585, %v583
      %v780 = vpack.c.b16 %v586, %v584
      %v781 = vpack.c.b16 %v589, %v587
      %v782 = vpack.c.b16 %v590, %v588
      %v783 = vpack.c.b16 %v593, %v591
      %v784 = vpack.c.b16 %v594, %v592
      %v785 = vpack.c.b16 %v597, %v595
      %v786 = vpack.c.b16 %v598, %v596
      %v787 = vpack.c.b16 %v601, %v599
      %v788 = vpack.c.b16 %v602, %v600
      %v789 = vpack.c.b16 %v605, %v603
      %v790 = vpack.c.b16 %v606, %v604
      %v791 = vpack.c.b16 %v609, %v607
      %v792 = vpack.c.b16 %v610, %v608
      %v793 = vpack.c.b16 %v613, %v611
      %v794 = vpack.c.b16 %v614, %v612
      %v795 = vpack.c.b16 %v617, %v615
      %v796 = vpack.c.b16 %v618, %v616
      %v797 = vpack.c.b16 %v621, %v619
      %v798 = vpack.c.b16 %v622, %v620
      %v799 = vpack.c.b16 %v625, %v623
      %v800 = vpack.c.b16 %v626, %v624
      %v801 = vpack.c.b16 %v629, %v627
      %v802 = vpack.c.b16 %v630, %v628
      %v803 = vpack.c.b16 %v633, %v631
      %v804 = vpack.c.b16 %v634, %v632
      %v805 = vpack.c.b16 %v637, %v635
      %v806 = vpack.c.b16 %v638, %v636
      %v807 = vpack.c.b16 %v641, %v639
      %v808 = vpack.c.b16 %v642, %v640
      %v809 = vpack.c.b16 %v645, %v643
      %v810 = vpack.c.b16 %v646, %v644
      %v811 = vpack.c.b16 %v649, %v647
      %v812 = vpack.c.b16 %v650, %v648
      %v813 = vpack.c.b16 %v653, %v651
      %v814 = vpack.c.b16 %v654, %v652
      %v815 = vpack.c.b16 %v657, %v655
      %v816 = vpack.c.b16 %v658, %v656
      %v817 = vpack.c.b16 %v661, %v659
      %v818 = vpack.c.b16 %v662, %v660
      %v819 = vpack.c.b16 %v665, %v663
      %v820 = vpack.c.b16 %v666, %v664
      %v821 = vpack.c.b16 %v669, %v667
      %v822 = vpack.c.b16 %v670, %v668
      %v823 = vpack.c.b16 %v673, %v671
      %v824 = vpack.c.b16 %v674, %v672
      %v825 = vpack.c.b16 %v677, %v675
      %v826 = vpack.c.b16 %v678, %v676
      %v827 = vpack.c.b16 %v681, %v679
      %v828 = vpack.c.b16 %v682, %v680
      %v829 = vpack.c.b16 %v685, %v683
      %v830 = vpack.c.b16 %v686, %v684
      %v831 = vpack.c.b16 %v689, %v687
      %v832 = vpack.c.b16 %v690, %v688
      %v833 = vpack.c.b16 %v693, %v691
      %v834 = vpack.c.b16 %v694, %v692
      %v835 = vpack.c.b16 %v697, %v695
      %v836 = vpack.c.b16 %v698, %v696
      %v837 = vpack.c.b16 %v701, %v699
      %v838 = vpack.c.b16 %v702, %v700
      %v839 = vpack.c.b16 %v705, %v703
      %v840 = vpack.c.b16 %v706, %v704
      %v841 = vpack.c.b16 %v709, %v707
      %v842 = vpack.c.b16 %v710, %v708
      %v843 = vpack.c.b16 %v713, %v711
      %v844 = vpack.c.b16 %v714, %v712
      %v845 = vpack.c.b16 %v717, %v715
      %v846 = vpack.c.b16 %v718, %v716
      %v930 = vunpack.c.l.b16 %v316
      %v931 = vunpack.c.l.b16 %v317
      %v932 = vunpack.c.l.b16 %v318
      %v933 = vunpack.c.l.b16 %v319
      %v934 = vunpack.c.l.b16 %v320
      %v935 = vunpack.c.l.b16 %v321
      %v936 = vunpack.c.l.b16 %v322
      %v937 = vunpack.c.l.b16 %v323
      %v938 = vunpack.c.l.b16 %v324
      %v939 = vunpack.c.l.b16 %v325
      %v940 = vunpack.c.l.b16 %v326
      %v941 = vunpack.c.l.b16 %v327
      %v942 = vunpack.c.l.b16 %v328
      %v943 = vunpack.c.l.b16 %v329
      %v944 = vunpack.c.l.b16 %v330
      %v945 = vunpack.c.l.b16 %v331
      %v946 = vunpack.c.l.b16 %v332
      %v947 = vunpack.c.l.b16 %v333
      %v948 = vunpack.c.l.b16 %v334
      %v949 = vpack.c.b16 %v931, %v930
      %v950 = vpack.c.b16 %v933, %v932
      %v951 = vpack.c.b16 %v935, %v934
      %v952 = vpack.c.b16 %v937, %v936
      %v953 = vpack.c.b16 %v939, %v938
      %v954 = vpack.c.b16 %v941, %v940
      %v955 = vpack.c.b16 %v943, %v942
      %v956 = vpack.c.b16 %v945, %v944
      %v957 = vpack.c.b16 %v947, %v946
      %v958 = vpack.c.b16 %v948, %v948
      %vm968 = vcmask 154624
      %v970 = vsel %vm968, %v720, 0
      %v973 = vsel %vm968, %v722, 0
      %v976 = vsel %vm968, %v724, 0
      %v979 = vsel %vm968, %v726, 0
      %v982 = vsel %vm968, %v728, 0
      %v985 = vsel %vm968, %v730, 0
      %v988 = vsel %vm968, %v732, 0
      %v991 = vsel %vm968, %v734, 0
      %v994 = vsel %vm968, %v736, 0
      %v997 = vsel %vm968, %v738, 0
      %v1000 = vsel %vm968, %v740, 0
      %v1003 = vsel %vm968, %v742, 0
      %v1006 = vsel %vm968, %v744, 0
      %v1009 = vsel %vm968, %v746, 0
      %v1012 = vsel %vm968, %v748, 0
      %v1015 = vsel %vm968, %v750, 0
      %v1018 = vsel %vm968, %v752, 0
      %v1021 = vsel %vm968, %v754, 0
      %v1024 = vsel %vm968, %v756, 0
      %v1027 = vsel %vm968, %v758, 0
      %v1030 = vsel %vm968, %v760, 0
      %v1033 = vsel %vm968, %v762, 0
      %v1036 = vsel %vm968, %v764, 0
      %v1039 = vsel %vm968, %v766, 0
      %v1042 = vsel %vm968, %v768, 0
      %v1045 = vsel %vm968, %v770, 0
      %v1048 = vsel %vm968, %v772, 0
      %v1051 = vsel %vm968, %v774, 0
      %v1054 = vsel %vm968, %v776, 0
      %v1057 = vsel %vm968, %v778, 0
      %v1060 = vsel %vm968, %v780, 0
      %v1063 = vsel %vm968, %v782, 0
      %v1066 = vsel %vm968, %v784, 0
      %v1069 = vsel %vm968, %v786, 0
      %v1072 = vsel %vm968, %v788, 0
      %v1075 = vsel %vm968, %v790, 0
      %v1078 = vsel %vm968, %v792, 0
      %v1081 = vsel %vm968, %v794, 0
      %v1084 = vsel %vm968, %v796, 0
      %v1087 = vsel %vm968, %v798, 0
      %v1090 = vsel %vm968, %v800, 0
      %v1093 = vsel %vm968, %v802, 0
      %v1096 = vsel %vm968, %v804, 0
      %v1099 = vsel %vm968, %v806, 0
      %v1102 = vsel %vm968, %v808, 0
      %v1105 = vsel %vm968, %v810, 0
      %v1108 = vsel %vm968, %v812, 0
      %v1111 = vsel %vm968, %v814, 0
      %v1114 = vsel %vm968, %v816, 0
      %v1117 = vsel %vm968, %v818, 0
      %v1120 = vsel %vm968, %v820, 0
      %v1123 = vsel %vm968, %v822, 0
      %v1126 = vsel %vm968, %v824, 0
      %v1129 = vsel %vm968, %v826, 0
      %v1132 = vsel %vm968, %v828, 0
      %v1135 = vsel %vm968, %v830, 0
      %v1138 = vsel %vm968, %v832, 0
      %v1141 = vsel %vm968, %v834, 0
      %v1144 = vsel %vm968, %v836, 0
      %v1147 = vsel %vm968, %v838, 0
      %v1150 = vsel %vm968, %v840, 0
      %v1153 = vsel %vm968, %v842, 0
      %v1156 = vsel %vm968, %v844, 0
      %v1159 = vsel %vm968, %v846, 0
      %vm1161 = vcmask 1040384
      %vm1162 = vcmask 1041408
      %v1163 = vsel %vm1161, 4294967295, 65535
      %v1164 = vsel %vm1162, %v1163, 0
      %v1166 = vand.u32 %v958, %v1164
      %1168 = vmatpush.bf16.msra.mxu0 %v956
      %1169 = vmatpush.bf16.msra.mxu0 %v955
      %1170 = vmatpush.bf16.msra.mxu0 %v954
      %1171 = vmatpush.bf16.msra.mxu0 %v953
      %1172 = vmatpush.bf16.msra.mxu0 %v952
      %1173 = vmatpush.bf16.msra.mxu0 %v951
      %1174 = vmatpush.bf16.msra.mxu0 %v950
      %1175 = vmatpush.bf16.msra.mxu0 %v949
      %1176 = vmatmul.bf16.gmra.mxu0 %v719
      %v1177 = vpop.f32.mrf.mxu0
      %v1178 = vadd.f32 0.0, %v1177
      %v1179 = vpop.f32.mrf.mxu0
      %v1180 = vadd.f32 0.0, %v1179
      %1181 = vmatmul.bf16.gmra.mxu0 %v721
      %v1182 = vpop.f32.mrf.mxu0
      %v1183 = vadd.f32 0.0, %v1182
      %v1184 = vpop.f32.mrf.mxu0
      %v1185 = vadd.f32 0.0, %v1184
      %1186 = vmatmul.bf16.gmra.mxu0 %v723
      %v1187 = vpop.f32.mrf.mxu0
      %v1188 = vadd.f32 0.0, %v1187
      %v1189 = vpop.f32.mrf.mxu0
      %v1190 = vadd.f32 0.0, %v1189
      %1191 = vmatmul.bf16.gmra.mxu0 %v725
      %v1192 = vpop.f32.mrf.mxu0
      %v1193 = vadd.f32 0.0, %v1192
      %v1194 = vpop.f32.mrf.mxu0
      %v1195 = vadd.f32 0.0, %v1194
      %1196 = vmatmul.bf16.gmra.mxu0 %v727
      %v1197 = vpop.f32.mrf.mxu0
      %v1198 = vadd.f32 0.0, %v1197
      %v1199 = vpop.f32.mrf.mxu0
      %v1200 = vadd.f32 0.0, %v1199
      %1201 = vmatmul.bf16.gmra.mxu0 %v729
      %v1202 = vpop.f32.mrf.mxu0
      %v1203 = vadd.f32 0.0, %v1202
      %v1204 = vpop.f32.mrf.mxu0
      %v1205 = vadd.f32 0.0, %v1204
      %1206 = vmatmul.bf16.gmra.mxu0 %v731
      %v1207 = vpop.f32.mrf.mxu0
      %v1208 = vadd.f32 0.0, %v1207
      %v1209 = vpop.f32.mrf.mxu0
      %v1210 = vadd.f32 0.0, %v1209
      %1211 = vmatmul.bf16.gmra.mxu0 %v733
      %v1212 = vpop.f32.mrf.mxu0
      %v1213 = vadd.f32 0.0, %v1212
      %v1214 = vpop.f32.mrf.mxu0
      %v1215 = vadd.f32 0.0, %v1214
      %1216 = vmatmul.bf16.gmra.mxu0 %v735
      %v1217 = vpop.f32.mrf.mxu0
      %v1218 = vadd.f32 0.0, %v1217
      %v1219 = vpop.f32.mrf.mxu0
      %v1220 = vadd.f32 0.0, %v1219
      %1221 = vmatmul.bf16.gmra.mxu0 %v737
      %v1222 = vpop.f32.mrf.mxu0
      %v1223 = vadd.f32 0.0, %v1222
      %v1224 = vpop.f32.mrf.mxu0
      %v1225 = vadd.f32 0.0, %v1224
      %1226 = vmatmul.bf16.gmra.mxu0 %v739
      %v1227 = vpop.f32.mrf.mxu0
      %v1228 = vadd.f32 0.0, %v1227
      %v1229 = vpop.f32.mrf.mxu0
      %v1230 = vadd.f32 0.0, %v1229
      %1231 = vmatmul.bf16.gmra.mxu0 %v741
      %v1232 = vpop.f32.mrf.mxu0
      %v1233 = vadd.f32 0.0, %v1232
      %v1234 = vpop.f32.mrf.mxu0
      %v1235 = vadd.f32 0.0, %v1234
      %1236 = vmatmul.bf16.gmra.mxu0 %v743
      %v1237 = vpop.f32.mrf.mxu0
      %v1238 = vadd.f32 0.0, %v1237
      %v1239 = vpop.f32.mrf.mxu0
      %v1240 = vadd.f32 0.0, %v1239
      %1241 = vmatmul.bf16.gmra.mxu0 %v745
      %v1242 = vpop.f32.mrf.mxu0
      %v1243 = vadd.f32 0.0, %v1242
      %v1244 = vpop.f32.mrf.mxu0
      %v1245 = vadd.f32 0.0, %v1244
      %1246 = vmatmul.bf16.gmra.mxu0 %v747
      %v1247 = vpop.f32.mrf.mxu0
      %v1248 = vadd.f32 0.0, %v1247
      %v1249 = vpop.f32.mrf.mxu0
      %v1250 = vadd.f32 0.0, %v1249
      %1251 = vmatmul.bf16.gmra.mxu0 %v749
      %v1252 = vpop.f32.mrf.mxu0
      %v1253 = vadd.f32 0.0, %v1252
      %v1254 = vpop.f32.mrf.mxu0
      %v1255 = vadd.f32 0.0, %v1254
      %1256 = vmatmul.bf16.gmra.mxu0 %v751
      %v1257 = vpop.f32.mrf.mxu0
      %v1258 = vadd.f32 0.0, %v1257
      %v1259 = vpop.f32.mrf.mxu0
      %v1260 = vadd.f32 0.0, %v1259
      %1261 = vmatmul.bf16.gmra.mxu0 %v753
      %v1262 = vpop.f32.mrf.mxu0
      %v1263 = vadd.f32 0.0, %v1262
      %v1264 = vpop.f32.mrf.mxu0
      %v1265 = vadd.f32 0.0, %v1264
      %1266 = vmatmul.bf16.gmra.mxu0 %v755
      %v1267 = vpop.f32.mrf.mxu0
      %v1268 = vadd.f32 0.0, %v1267
      %v1269 = vpop.f32.mrf.mxu0
      %v1270 = vadd.f32 0.0, %v1269
      %1271 = vmatmul.bf16.gmra.mxu0 %v757
      %v1272 = vpop.f32.mrf.mxu0
      %v1273 = vadd.f32 0.0, %v1272
      %v1274 = vpop.f32.mrf.mxu0
      %v1275 = vadd.f32 0.0, %v1274
      %1276 = vmatmul.bf16.gmra.mxu0 %v759
      %v1277 = vpop.f32.mrf.mxu0
      %v1278 = vadd.f32 0.0, %v1277
      %v1279 = vpop.f32.mrf.mxu0
      %v1280 = vadd.f32 0.0, %v1279
      %1281 = vmatmul.bf16.gmra.mxu0 %v761
      %v1282 = vpop.f32.mrf.mxu0
      %v1283 = vadd.f32 0.0, %v1282
      %v1284 = vpop.f32.mrf.mxu0
      %v1285 = vadd.f32 0.0, %v1284
      %1286 = vmatmul.bf16.gmra.mxu0 %v763
      %v1287 = vpop.f32.mrf.mxu0
      %v1288 = vadd.f32 0.0, %v1287
      %v1289 = vpop.f32.mrf.mxu0
      %v1290 = vadd.f32 0.0, %v1289
      %1291 = vmatmul.bf16.gmra.mxu0 %v765
      %v1292 = vpop.f32.mrf.mxu0
      %v1293 = vadd.f32 0.0, %v1292
      %v1294 = vpop.f32.mrf.mxu0
      %v1295 = vadd.f32 0.0, %v1294
      %1296 = vmatmul.bf16.gmra.mxu0 %v767
      %v1297 = vpop.f32.mrf.mxu0
      %v1298 = vadd.f32 0.0, %v1297
      %v1299 = vpop.f32.mrf.mxu0
      %v1300 = vadd.f32 0.0, %v1299
      %1301 = vmatmul.bf16.gmra.mxu0 %v769
      %v1302 = vpop.f32.mrf.mxu0
      %v1303 = vadd.f32 0.0, %v1302
      %v1304 = vpop.f32.mrf.mxu0
      %v1305 = vadd.f32 0.0, %v1304
      %1306 = vmatmul.bf16.gmra.mxu0 %v771
      %v1307 = vpop.f32.mrf.mxu0
      %v1308 = vadd.f32 0.0, %v1307
      %v1309 = vpop.f32.mrf.mxu0
      %v1310 = vadd.f32 0.0, %v1309
      %1311 = vmatmul.bf16.gmra.mxu0 %v773
      %v1312 = vpop.f32.mrf.mxu0
      %v1313 = vadd.f32 0.0, %v1312
      %v1314 = vpop.f32.mrf.mxu0
      %v1315 = vadd.f32 0.0, %v1314
      %1316 = vmatmul.bf16.gmra.mxu0 %v775
      %v1317 = vpop.f32.mrf.mxu0
      %v1318 = vadd.f32 0.0, %v1317
      %v1319 = vpop.f32.mrf.mxu0
      %v1320 = vadd.f32 0.0, %v1319
      %1321 = vmatmul.bf16.gmra.mxu0 %v777
      %v1322 = vpop.f32.mrf.mxu0
      %v1323 = vadd.f32 0.0, %v1322
      %v1324 = vpop.f32.mrf.mxu0
      %v1325 = vadd.f32 0.0, %v1324
      %1326 = vmatmul.bf16.gmra.mxu0 %v779
      %v1327 = vpop.f32.mrf.mxu0
      %v1328 = vadd.f32 0.0, %v1327
      %v1329 = vpop.f32.mrf.mxu0
      %v1330 = vadd.f32 0.0, %v1329
      %1331 = vmatmul.bf16.gmra.mxu0 %v781
      %v1332 = vpop.f32.mrf.mxu0
      %v1333 = vadd.f32 0.0, %v1332
      %v1334 = vpop.f32.mrf.mxu0
      %v1335 = vadd.f32 0.0, %v1334
      %1336 = vmatmul.bf16.gmra.mxu0 %v783
      %v1337 = vpop.f32.mrf.mxu0
      %v1338 = vadd.f32 0.0, %v1337
      %v1339 = vpop.f32.mrf.mxu0
      %v1340 = vadd.f32 0.0, %v1339
      %1341 = vmatmul.bf16.gmra.mxu0 %v785
      %v1342 = vpop.f32.mrf.mxu0
      %v1343 = vadd.f32 0.0, %v1342
      %v1344 = vpop.f32.mrf.mxu0
      %v1345 = vadd.f32 0.0, %v1344
      %1346 = vmatmul.bf16.gmra.mxu0 %v787
      %v1347 = vpop.f32.mrf.mxu0
      %v1348 = vadd.f32 0.0, %v1347
      %v1349 = vpop.f32.mrf.mxu0
      %v1350 = vadd.f32 0.0, %v1349
      %1351 = vmatmul.bf16.gmra.mxu0 %v789
      %v1352 = vpop.f32.mrf.mxu0
      %v1353 = vadd.f32 0.0, %v1352
      %v1354 = vpop.f32.mrf.mxu0
      %v1355 = vadd.f32 0.0, %v1354
      %1356 = vmatmul.bf16.gmra.mxu0 %v791
      %v1357 = vpop.f32.mrf.mxu0
      %v1358 = vadd.f32 0.0, %v1357
      %v1359 = vpop.f32.mrf.mxu0
      %v1360 = vadd.f32 0.0, %v1359
      %1361 = vmatmul.bf16.gmra.mxu0 %v793
      %v1362 = vpop.f32.mrf.mxu0
      %v1363 = vadd.f32 0.0, %v1362
      %v1364 = vpop.f32.mrf.mxu0
      %v1365 = vadd.f32 0.0, %v1364
      %1366 = vmatmul.bf16.gmra.mxu0 %v795
      %v1367 = vpop.f32.mrf.mxu0
      %v1368 = vadd.f32 0.0, %v1367
      %v1369 = vpop.f32.mrf.mxu0
      %v1370 = vadd.f32 0.0, %v1369
      %1371 = vmatmul.bf16.gmra.mxu0 %v797
      %v1372 = vpop.f32.mrf.mxu0
      %v1373 = vadd.f32 0.0, %v1372
      %v1374 = vpop.f32.mrf.mxu0
      %v1375 = vadd.f32 0.0, %v1374
      %1376 = vmatmul.bf16.gmra.mxu0 %v799
      %v1377 = vpop.f32.mrf.mxu0
      %v1378 = vadd.f32 0.0, %v1377
      %v1379 = vpop.f32.mrf.mxu0
      %v1380 = vadd.f32 0.0, %v1379
      %1381 = vmatmul.bf16.gmra.mxu0 %v801
      %v1382 = vpop.f32.mrf.mxu0
      %v1383 = vadd.f32 0.0, %v1382
      %v1384 = vpop.f32.mrf.mxu0
      %v1385 = vadd.f32 0.0, %v1384
      %1386 = vmatmul.bf16.gmra.mxu0 %v803
      %v1387 = vpop.f32.mrf.mxu0
      %v1388 = vadd.f32 0.0, %v1387
      %v1389 = vpop.f32.mrf.mxu0
      %v1390 = vadd.f32 0.0, %v1389
      %1391 = vmatmul.bf16.gmra.mxu0 %v805
      %v1392 = vpop.f32.mrf.mxu0
      %v1393 = vadd.f32 0.0, %v1392
      %v1394 = vpop.f32.mrf.mxu0
      %v1395 = vadd.f32 0.0, %v1394
      %1396 = vmatmul.bf16.gmra.mxu0 %v807
      %v1397 = vpop.f32.mrf.mxu0
      %v1398 = vadd.f32 0.0, %v1397
      %v1399 = vpop.f32.mrf.mxu0
      %v1400 = vadd.f32 0.0, %v1399
      %1401 = vmatmul.bf16.gmra.mxu0 %v809
      %v1402 = vpop.f32.mrf.mxu0
      %v1403 = vadd.f32 0.0, %v1402
      %v1404 = vpop.f32.mrf.mxu0
      %v1405 = vadd.f32 0.0, %v1404
      %1406 = vmatmul.bf16.gmra.mxu0 %v811
      %v1407 = vpop.f32.mrf.mxu0
      %v1408 = vadd.f32 0.0, %v1407
      %v1409 = vpop.f32.mrf.mxu0
      %v1410 = vadd.f32 0.0, %v1409
      %1411 = vmatmul.bf16.gmra.mxu0 %v813
      %v1412 = vpop.f32.mrf.mxu0
      %v1413 = vadd.f32 0.0, %v1412
      %v1414 = vpop.f32.mrf.mxu0
      %v1415 = vadd.f32 0.0, %v1414
      %1416 = vmatmul.bf16.gmra.mxu0 %v815
      %v1417 = vpop.f32.mrf.mxu0
      %v1418 = vadd.f32 0.0, %v1417
      %v1419 = vpop.f32.mrf.mxu0
      %v1420 = vadd.f32 0.0, %v1419
      %1421 = vmatmul.bf16.gmra.mxu0 %v817
      %v1422 = vpop.f32.mrf.mxu0
      %v1423 = vadd.f32 0.0, %v1422
      %v1424 = vpop.f32.mrf.mxu0
      %v1425 = vadd.f32 0.0, %v1424
      %1426 = vmatmul.bf16.gmra.mxu0 %v819
      %v1427 = vpop.f32.mrf.mxu0
      %v1428 = vadd.f32 0.0, %v1427
      %v1429 = vpop.f32.mrf.mxu0
      %v1430 = vadd.f32 0.0, %v1429
      %1431 = vmatmul.bf16.gmra.mxu0 %v821
      %v1432 = vpop.f32.mrf.mxu0
      %v1433 = vadd.f32 0.0, %v1432
      %v1434 = vpop.f32.mrf.mxu0
      %v1435 = vadd.f32 0.0, %v1434
      %1436 = vmatmul.bf16.gmra.mxu0 %v823
      %v1437 = vpop.f32.mrf.mxu0
      %v1438 = vadd.f32 0.0, %v1437
      %v1439 = vpop.f32.mrf.mxu0
      %v1440 = vadd.f32 0.0, %v1439
      %1441 = vmatmul.bf16.gmra.mxu0 %v825
      %v1442 = vpop.f32.mrf.mxu0
      %v1443 = vadd.f32 0.0, %v1442
      %v1444 = vpop.f32.mrf.mxu0
      %v1445 = vadd.f32 0.0, %v1444
      %1446 = vmatmul.bf16.gmra.mxu0 %v827
      %v1447 = vpop.f32.mrf.mxu0
      %v1448 = vadd.f32 0.0, %v1447
      %v1449 = vpop.f32.mrf.mxu0
      %v1450 = vadd.f32 0.0, %v1449
      %1451 = vmatmul.bf16.gmra.mxu0 %v829
      %v1452 = vpop.f32.mrf.mxu0
      %v1453 = vadd.f32 0.0, %v1452
      %v1454 = vpop.f32.mrf.mxu0
      %v1455 = vadd.f32 0.0, %v1454
      %1456 = vmatmul.bf16.gmra.mxu0 %v831
      %v1457 = vpop.f32.mrf.mxu0
      %v1458 = vadd.f32 0.0, %v1457
      %v1459 = vpop.f32.mrf.mxu0
      %v1460 = vadd.f32 0.0, %v1459
      %1461 = vmatmul.bf16.gmra.mxu0 %v833
      %v1462 = vpop.f32.mrf.mxu0
      %v1463 = vadd.f32 0.0, %v1462
      %v1464 = vpop.f32.mrf.mxu0
      %v1465 = vadd.f32 0.0, %v1464
      %1466 = vmatmul.bf16.gmra.mxu0 %v835
      %v1467 = vpop.f32.mrf.mxu0
      %v1468 = vadd.f32 0.0, %v1467
      %v1469 = vpop.f32.mrf.mxu0
      %v1470 = vadd.f32 0.0, %v1469
      %1471 = vmatmul.bf16.gmra.mxu0 %v837
      %v1472 = vpop.f32.mrf.mxu0
      %v1473 = vadd.f32 0.0, %v1472
      %v1474 = vpop.f32.mrf.mxu0
      %v1475 = vadd.f32 0.0, %v1474
      %1476 = vmatmul.bf16.gmra.mxu0 %v839
      %v1477 = vpop.f32.mrf.mxu0
      %v1478 = vadd.f32 0.0, %v1477
      %v1479 = vpop.f32.mrf.mxu0
      %v1480 = vadd.f32 0.0, %v1479
      %1481 = vmatmul.bf16.gmra.mxu0 %v841
      %v1482 = vpop.f32.mrf.mxu0
      %v1483 = vadd.f32 0.0, %v1482
      %v1484 = vpop.f32.mrf.mxu0
      %v1485 = vadd.f32 0.0, %v1484
      %1486 = vmatmul.bf16.gmra.mxu0 %v843
      %v1487 = vpop.f32.mrf.mxu0
      %v1488 = vadd.f32 0.0, %v1487
      %v1489 = vpop.f32.mrf.mxu0
      %v1490 = vadd.f32 0.0, %v1489
      %1491 = vmatmul.bf16.gmra.mxu0 %v845
      %v1492 = vpop.f32.mrf.mxu0
      %v1493 = vadd.f32 0.0, %v1492
      %v1494 = vpop.f32.mrf.mxu0
      %v1495 = vadd.f32 0.0, %v1494
      %1496 = vdwg.mxu0
      %1497 = vmatpush.bf16.msra.mxu0 0
      %1498 = vmatpush.bf16.msra.mxu0 0
      %1499 = vmatpush.bf16.msra.mxu0 0
      %1500 = vmatpush.bf16.msra.mxu0 0
      %1501 = vmatpush.bf16.msra.mxu0 0
      %1502 = vmatpush.bf16.msra.mxu0 0
      %1503 = vmatpush.bf16.msra.mxu0 %v1166
      %1504 = vmatpush.bf16.msra.mxu0 %v957
      %1505 = vmatmul.bf16.gmra.mxu0 %v970
      %v1506 = vpop.f32.mrf.mxu0
      %v1507 = vadd.f32 %v1178, %v1506
      %v1508 = vpop.f32.mrf.mxu0
      %v1509 = vadd.f32 %v1180, %v1508
      %1510 = vmatmul.bf16.gmra.mxu0 %v973
      %v1511 = vpop.f32.mrf.mxu0
      %v1512 = vadd.f32 %v1183, %v1511
      %v1513 = vpop.f32.mrf.mxu0
      %v1514 = vadd.f32 %v1185, %v1513
      %1515 = vmatmul.bf16.gmra.mxu0 %v976
      %v1516 = vpop.f32.mrf.mxu0
      %v1517 = vadd.f32 %v1188, %v1516
      %v1518 = vpop.f32.mrf.mxu0
      %v1519 = vadd.f32 %v1190, %v1518
      %1520 = vmatmul.bf16.gmra.mxu0 %v979
      %v1521 = vpop.f32.mrf.mxu0
      %v1522 = vadd.f32 %v1193, %v1521
      %v1523 = vpop.f32.mrf.mxu0
      %v1524 = vadd.f32 %v1195, %v1523
      %1525 = vmatmul.bf16.gmra.mxu0 %v982
      %v1526 = vpop.f32.mrf.mxu0
      %v1527 = vadd.f32 %v1198, %v1526
      %v1528 = vpop.f32.mrf.mxu0
      %v1529 = vadd.f32 %v1200, %v1528
      %1530 = vmatmul.bf16.gmra.mxu0 %v985
      %v1531 = vpop.f32.mrf.mxu0
      %v1532 = vadd.f32 %v1203, %v1531
      %v1533 = vpop.f32.mrf.mxu0
      %v1534 = vadd.f32 %v1205, %v1533
      %1535 = vmatmul.bf16.gmra.mxu0 %v988
      %v1536 = vpop.f32.mrf.mxu0
      %v1537 = vadd.f32 %v1208, %v1536
      %v1538 = vpop.f32.mrf.mxu0
      %v1539 = vadd.f32 %v1210, %v1538
      %1540 = vmatmul.bf16.gmra.mxu0 %v991
      %v1541 = vpop.f32.mrf.mxu0
      %v1542 = vadd.f32 %v1213, %v1541
      %v1543 = vpop.f32.mrf.mxu0
      %v1544 = vadd.f32 %v1215, %v1543
      %1545 = vmatmul.bf16.gmra.mxu0 %v994
      %v1546 = vpop.f32.mrf.mxu0
      %v1547 = vadd.f32 %v1218, %v1546
      %v1548 = vpop.f32.mrf.mxu0
      %v1549 = vadd.f32 %v1220, %v1548
      %1550 = vmatmul.bf16.gmra.mxu0 %v997
      %v1551 = vpop.f32.mrf.mxu0
      %v1552 = vadd.f32 %v1223, %v1551
      %v1553 = vpop.f32.mrf.mxu0
      %v1554 = vadd.f32 %v1225, %v1553
      %1555 = vmatmul.bf16.gmra.mxu0 %v1000
      %v1556 = vpop.f32.mrf.mxu0
      %v1557 = vadd.f32 %v1228, %v1556
      %v1558 = vpop.f32.mrf.mxu0
      %v1559 = vadd.f32 %v1230, %v1558
      %1560 = vmatmul.bf16.gmra.mxu0 %v1003
      %v1561 = vpop.f32.mrf.mxu0
      %v1562 = vadd.f32 %v1233, %v1561
      %v1563 = vpop.f32.mrf.mxu0
      %v1564 = vadd.f32 %v1235, %v1563
      %1565 = vmatmul.bf16.gmra.mxu0 %v1006
      %v1566 = vpop.f32.mrf.mxu0
      %v1567 = vadd.f32 %v1238, %v1566
      %v1568 = vpop.f32.mrf.mxu0
      %v1569 = vadd.f32 %v1240, %v1568
      %1570 = vmatmul.bf16.gmra.mxu0 %v1009
      %v1571 = vpop.f32.mrf.mxu0
      %v1572 = vadd.f32 %v1243, %v1571
      %v1573 = vpop.f32.mrf.mxu0
      %v1574 = vadd.f32 %v1245, %v1573
      %1575 = vmatmul.bf16.gmra.mxu0 %v1012
      %v1576 = vpop.f32.mrf.mxu0
      %v1577 = vadd.f32 %v1248, %v1576
      %v1578 = vpop.f32.mrf.mxu0
      %v1579 = vadd.f32 %v1250, %v1578
      %1580 = vmatmul.bf16.gmra.mxu0 %v1015
      %v1581 = vpop.f32.mrf.mxu0
      %v1582 = vadd.f32 %v1253, %v1581
      %v1583 = vpop.f32.mrf.mxu0
      %v1584 = vadd.f32 %v1255, %v1583
      %1585 = vmatmul.bf16.gmra.mxu0 %v1018
      %v1586 = vpop.f32.mrf.mxu0
      %v1587 = vadd.f32 %v1258, %v1586
      %v1588 = vpop.f32.mrf.mxu0
      %v1589 = vadd.f32 %v1260, %v1588
      %1590 = vmatmul.bf16.gmra.mxu0 %v1021
      %v1591 = vpop.f32.mrf.mxu0
      %v1592 = vadd.f32 %v1263, %v1591
      %v1593 = vpop.f32.mrf.mxu0
      %v1594 = vadd.f32 %v1265, %v1593
      %1595 = vmatmul.bf16.gmra.mxu0 %v1024
      %v1596 = vpop.f32.mrf.mxu0
      %v1597 = vadd.f32 %v1268, %v1596
      %v1598 = vpop.f32.mrf.mxu0
      %v1599 = vadd.f32 %v1270, %v1598
      %1600 = vmatmul.bf16.gmra.mxu0 %v1027
      %v1601 = vpop.f32.mrf.mxu0
      %v1602 = vadd.f32 %v1273, %v1601
      %v1603 = vpop.f32.mrf.mxu0
      %v1604 = vadd.f32 %v1275, %v1603
      %1605 = vmatmul.bf16.gmra.mxu0 %v1030
      %v1606 = vpop.f32.mrf.mxu0
      %v1607 = vadd.f32 %v1278, %v1606
      %v1608 = vpop.f32.mrf.mxu0
      %v1609 = vadd.f32 %v1280, %v1608
      %1610 = vmatmul.bf16.gmra.mxu0 %v1033
      %v1611 = vpop.f32.mrf.mxu0
      %v1612 = vadd.f32 %v1283, %v1611
      %v1613 = vpop.f32.mrf.mxu0
      %v1614 = vadd.f32 %v1285, %v1613
      %1615 = vmatmul.bf16.gmra.mxu0 %v1036
      %v1616 = vpop.f32.mrf.mxu0
      %v1617 = vadd.f32 %v1288, %v1616
      %v1618 = vpop.f32.mrf.mxu0
      %v1619 = vadd.f32 %v1290, %v1618
      %1620 = vmatmul.bf16.gmra.mxu0 %v1039
      %v1621 = vpop.f32.mrf.mxu0
      %v1622 = vadd.f32 %v1293, %v1621
      %v1623 = vpop.f32.mrf.mxu0
      %v1624 = vadd.f32 %v1295, %v1623
      %1625 = vmatmul.bf16.gmra.mxu0 %v1042
      %v1626 = vpop.f32.mrf.mxu0
      %v1627 = vadd.f32 %v1298, %v1626
      %v1628 = vpop.f32.mrf.mxu0
      %v1629 = vadd.f32 %v1300, %v1628
      %1630 = vmatmul.bf16.gmra.mxu0 %v1045
      %v1631 = vpop.f32.mrf.mxu0
      %v1632 = vadd.f32 %v1303, %v1631
      %v1633 = vpop.f32.mrf.mxu0
      %v1634 = vadd.f32 %v1305, %v1633
      %1635 = vmatmul.bf16.gmra.mxu0 %v1048
      %v1636 = vpop.f32.mrf.mxu0
      %v1637 = vadd.f32 %v1308, %v1636
      %v1638 = vpop.f32.mrf.mxu0
      %v1639 = vadd.f32 %v1310, %v1638
      %1640 = vmatmul.bf16.gmra.mxu0 %v1051
      %v1641 = vpop.f32.mrf.mxu0
      %v1642 = vadd.f32 %v1313, %v1641
      %v1643 = vpop.f32.mrf.mxu0
      %v1644 = vadd.f32 %v1315, %v1643
      %1645 = vmatmul.bf16.gmra.mxu0 %v1054
      %v1646 = vpop.f32.mrf.mxu0
      %v1647 = vadd.f32 %v1318, %v1646
      %v1648 = vpop.f32.mrf.mxu0
      %v1649 = vadd.f32 %v1320, %v1648
      %1650 = vmatmul.bf16.gmra.mxu0 %v1057
      %v1651 = vpop.f32.mrf.mxu0
      %v1652 = vadd.f32 %v1323, %v1651
      %v1653 = vpop.f32.mrf.mxu0
      %v1654 = vadd.f32 %v1325, %v1653
      %1655 = vmatmul.bf16.gmra.mxu0 %v1060
      %v1656 = vpop.f32.mrf.mxu0
      %v1657 = vadd.f32 %v1328, %v1656
      %v1658 = vpop.f32.mrf.mxu0
      %v1659 = vadd.f32 %v1330, %v1658
      %1660 = vmatmul.bf16.gmra.mxu0 %v1063
      %v1661 = vpop.f32.mrf.mxu0
      %v1662 = vadd.f32 %v1333, %v1661
      %v1663 = vpop.f32.mrf.mxu0
      %v1664 = vadd.f32 %v1335, %v1663
      %1665 = vmatmul.bf16.gmra.mxu0 %v1066
      %v1666 = vpop.f32.mrf.mxu0
      %v1667 = vadd.f32 %v1338, %v1666
      %v1668 = vpop.f32.mrf.mxu0
      %v1669 = vadd.f32 %v1340, %v1668
      %1670 = vmatmul.bf16.gmra.mxu0 %v1069
      %v1671 = vpop.f32.mrf.mxu0
      %v1672 = vadd.f32 %v1343, %v1671
      %v1673 = vpop.f32.mrf.mxu0
      %v1674 = vadd.f32 %v1345, %v1673
      %1675 = vmatmul.bf16.gmra.mxu0 %v1072
      %v1676 = vpop.f32.mrf.mxu0
      %v1677 = vadd.f32 %v1348, %v1676
      %v1678 = vpop.f32.mrf.mxu0
      %v1679 = vadd.f32 %v1350, %v1678
      %1680 = vmatmul.bf16.gmra.mxu0 %v1075
      %v1681 = vpop.f32.mrf.mxu0
      %v1682 = vadd.f32 %v1353, %v1681
      %v1683 = vpop.f32.mrf.mxu0
      %v1684 = vadd.f32 %v1355, %v1683
      %1685 = vmatmul.bf16.gmra.mxu0 %v1078
      %v1686 = vpop.f32.mrf.mxu0
      %v1687 = vadd.f32 %v1358, %v1686
      %v1688 = vpop.f32.mrf.mxu0
      %v1689 = vadd.f32 %v1360, %v1688
      %1690 = vmatmul.bf16.gmra.mxu0 %v1081
      %v1691 = vpop.f32.mrf.mxu0
      %v1692 = vadd.f32 %v1363, %v1691
      %v1693 = vpop.f32.mrf.mxu0
      %v1694 = vadd.f32 %v1365, %v1693
      %1695 = vmatmul.bf16.gmra.mxu0 %v1084
      %v1696 = vpop.f32.mrf.mxu0
      %v1697 = vadd.f32 %v1368, %v1696
      %v1698 = vpop.f32.mrf.mxu0
      %v1699 = vadd.f32 %v1370, %v1698
      %1700 = vmatmul.bf16.gmra.mxu0 %v1087
      %v1701 = vpop.f32.mrf.mxu0
      %v1702 = vadd.f32 %v1373, %v1701
      %v1703 = vpop.f32.mrf.mxu0
      %v1704 = vadd.f32 %v1375, %v1703
      %1705 = vmatmul.bf16.gmra.mxu0 %v1090
      %v1706 = vpop.f32.mrf.mxu0
      %v1707 = vadd.f32 %v1378, %v1706
      %v1708 = vpop.f32.mrf.mxu0
      %v1709 = vadd.f32 %v1380, %v1708
      %1710 = vmatmul.bf16.gmra.mxu0 %v1093
      %v1711 = vpop.f32.mrf.mxu0
      %v1712 = vadd.f32 %v1383, %v1711
      %v1713 = vpop.f32.mrf.mxu0
      %v1714 = vadd.f32 %v1385, %v1713
      %1715 = vmatmul.bf16.gmra.mxu0 %v1096
      %v1716 = vpop.f32.mrf.mxu0
      %v1717 = vadd.f32 %v1388, %v1716
      %v1718 = vpop.f32.mrf.mxu0
      %v1719 = vadd.f32 %v1390, %v1718
      %1720 = vmatmul.bf16.gmra.mxu0 %v1099
      %v1721 = vpop.f32.mrf.mxu0
      %v1722 = vadd.f32 %v1393, %v1721
      %v1723 = vpop.f32.mrf.mxu0
      %v1724 = vadd.f32 %v1395, %v1723
      %1725 = vmatmul.bf16.gmra.mxu0 %v1102
      %v1726 = vpop.f32.mrf.mxu0
      %v1727 = vadd.f32 %v1398, %v1726
      %v1728 = vpop.f32.mrf.mxu0
      %v1729 = vadd.f32 %v1400, %v1728
      %1730 = vmatmul.bf16.gmra.mxu0 %v1105
      %v1731 = vpop.f32.mrf.mxu0
      %v1732 = vadd.f32 %v1403, %v1731
      %v1733 = vpop.f32.mrf.mxu0
      %v1734 = vadd.f32 %v1405, %v1733
      %1735 = vmatmul.bf16.gmra.mxu0 %v1108
      %v1736 = vpop.f32.mrf.mxu0
      %v1737 = vadd.f32 %v1408, %v1736
      %v1738 = vpop.f32.mrf.mxu0
      %v1739 = vadd.f32 %v1410, %v1738
      %1740 = vmatmul.bf16.gmra.mxu0 %v1111
      %v1741 = vpop.f32.mrf.mxu0
      %v1742 = vadd.f32 %v1413, %v1741
      %v1743 = vpop.f32.mrf.mxu0
      %v1744 = vadd.f32 %v1415, %v1743
      %1745 = vmatmul.bf16.gmra.mxu0 %v1114
      %v1746 = vpop.f32.mrf.mxu0
      %v1747 = vadd.f32 %v1418, %v1746
      %v1748 = vpop.f32.mrf.mxu0
      %v1749 = vadd.f32 %v1420, %v1748
      %1750 = vmatmul.bf16.gmra.mxu0 %v1117
      %v1751 = vpop.f32.mrf.mxu0
      %v1752 = vadd.f32 %v1423, %v1751
      %v1753 = vpop.f32.mrf.mxu0
      %v1754 = vadd.f32 %v1425, %v1753
      %1755 = vmatmul.bf16.gmra.mxu0 %v1120
      %v1756 = vpop.f32.mrf.mxu0
      %v1757 = vadd.f32 %v1428, %v1756
      %v1758 = vpop.f32.mrf.mxu0
      %v1759 = vadd.f32 %v1430, %v1758
      %1760 = vmatmul.bf16.gmra.mxu0 %v1123
      %v1761 = vpop.f32.mrf.mxu0
      %v1762 = vadd.f32 %v1433, %v1761
      %v1763 = vpop.f32.mrf.mxu0
      %v1764 = vadd.f32 %v1435, %v1763
      %1765 = vmatmul.bf16.gmra.mxu0 %v1126
      %v1766 = vpop.f32.mrf.mxu0
      %v1767 = vadd.f32 %v1438, %v1766
      %v1768 = vpop.f32.mrf.mxu0
      %v1769 = vadd.f32 %v1440, %v1768
      %1770 = vmatmul.bf16.gmra.mxu0 %v1129
      %v1771 = vpop.f32.mrf.mxu0
      %v1772 = vadd.f32 %v1443, %v1771
      %v1773 = vpop.f32.mrf.mxu0
      %v1774 = vadd.f32 %v1445, %v1773
      %1775 = vmatmul.bf16.gmra.mxu0 %v1132
      %v1776 = vpop.f32.mrf.mxu0
      %v1777 = vadd.f32 %v1448, %v1776
      %v1778 = vpop.f32.mrf.mxu0
      %v1779 = vadd.f32 %v1450, %v1778
      %1780 = vmatmul.bf16.gmra.mxu0 %v1135
      %v1781 = vpop.f32.mrf.mxu0
      %v1782 = vadd.f32 %v1453, %v1781
      %v1783 = vpop.f32.mrf.mxu0
      %v1784 = vadd.f32 %v1455, %v1783
      %1785 = vmatmul.bf16.gmra.mxu0 %v1138
      %v1786 = vpop.f32.mrf.mxu0
      %v1787 = vadd.f32 %v1458, %v1786
      %v1788 = vpop.f32.mrf.mxu0
      %v1789 = vadd.f32 %v1460, %v1788
      %1790 = vmatmul.bf16.gmra.mxu0 %v1141
      %v1791 = vpop.f32.mrf.mxu0
      %v1792 = vadd.f32 %v1463, %v1791
      %v1793 = vpop.f32.mrf.mxu0
      %v1794 = vadd.f32 %v1465, %v1793
      %1795 = vmatmul.bf16.gmra.mxu0 %v1144
      %v1796 = vpop.f32.mrf.mxu0
      %v1797 = vadd.f32 %v1468, %v1796
      %v1798 = vpop.f32.mrf.mxu0
      %v1799 = vadd.f32 %v1470, %v1798
      %1800 = vmatmul.bf16.gmra.mxu0 %v1147
      %v1801 = vpop.f32.mrf.mxu0
      %v1802 = vadd.f32 %v1473, %v1801
      %v1803 = vpop.f32.mrf.mxu0
      %v1804 = vadd.f32 %v1475, %v1803
      %1805 = vmatmul.bf16.gmra.mxu0 %v1150
      %v1806 = vpop.f32.mrf.mxu0
      %v1807 = vadd.f32 %v1478, %v1806
      %v1808 = vpop.f32.mrf.mxu0
      %v1809 = vadd.f32 %v1480, %v1808
      %1810 = vmatmul.bf16.gmra.mxu0 %v1153
      %v1811 = vpop.f32.mrf.mxu0
      %v1812 = vadd.f32 %v1483, %v1811
      %v1813 = vpop.f32.mrf.mxu0
      %v1814 = vadd.f32 %v1485, %v1813
      %1815 = vmatmul.bf16.gmra.mxu0 %v1156
      %v1816 = vpop.f32.mrf.mxu0
      %v1817 = vadd.f32 %v1488, %v1816
      %v1818 = vpop.f32.mrf.mxu0
      %v1819 = vadd.f32 %v1490, %v1818
      %1820 = vmatmul.bf16.gmra.mxu0 %v1159
      %v1821 = vpop.f32.mrf.mxu0
      %v1822 = vadd.f32 %v1493, %v1821
      %v1823 = vpop.f32.mrf.mxu0
      %v1824 = vadd.f32 %v1495, %v1823
      %1825 = vdwg.mxu0
      %v1826 = vpack.c.bf16 %v1507, %v1507
      %v1827 = vpack.c.bf16 %v1509, %v1509
      %v1828 = vpack.c.bf16 %v1512, %v1512
      %v1829 = vpack.c.bf16 %v1514, %v1514
      %v1830 = vpack.c.bf16 %v1517, %v1517
      %v1831 = vpack.c.bf16 %v1519, %v1519
      %v1832 = vpack.c.bf16 %v1522, %v1522
      %v1833 = vpack.c.bf16 %v1524, %v1524
      %v1834 = vpack.c.bf16 %v1527, %v1527
      %v1835 = vpack.c.bf16 %v1529, %v1529
      %v1836 = vpack.c.bf16 %v1532, %v1532
      %v1837 = vpack.c.bf16 %v1534, %v1534
      %v1838 = vpack.c.bf16 %v1537, %v1537
      %v1839 = vpack.c.bf16 %v1539, %v1539
      %v1840 = vpack.c.bf16 %v1542, %v1542
      %v1841 = vpack.c.bf16 %v1544, %v1544
      %v1842 = vpack.c.bf16 %v1547, %v1547
      %v1843 = vpack.c.bf16 %v1549, %v1549
      %v1844 = vpack.c.bf16 %v1552, %v1552
      %v1845 = vpack.c.bf16 %v1554, %v1554
      %v1846 = vpack.c.bf16 %v1557, %v1557
      %v1847 = vpack.c.bf16 %v1559, %v1559
      %v1848 = vpack.c.bf16 %v1562, %v1562
      %v1849 = vpack.c.bf16 %v1564, %v1564
      %v1850 = vpack.c.bf16 %v1567, %v1567
      %v1851 = vpack.c.bf16 %v1569, %v1569
      %v1852 = vpack.c.bf16 %v1572, %v1572
      %v1853 = vpack.c.bf16 %v1574, %v1574
      %v1854 = vpack.c.bf16 %v1577, %v1577
      %v1855 = vpack.c.bf16 %v1579, %v1579
      %v1856 = vpack.c.bf16 %v1582, %v1582
      %v1857 = vpack.c.bf16 %v1584, %v1584
      %v1858 = vpack.c.bf16 %v1587, %v1587
      %v1859 = vpack.c.bf16 %v1589, %v1589
      %v1860 = vpack.c.bf16 %v1592, %v1592
      %v1861 = vpack.c.bf16 %v1594, %v1594
      %v1862 = vpack.c.bf16 %v1597, %v1597
      %v1863 = vpack.c.bf16 %v1599, %v1599
      %v1864 = vpack.c.bf16 %v1602, %v1602
      %v1865 = vpack.c.bf16 %v1604, %v1604
      %v1866 = vpack.c.bf16 %v1607, %v1607
      %v1867 = vpack.c.bf16 %v1609, %v1609
      %v1868 = vpack.c.bf16 %v1612, %v1612
      %v1869 = vpack.c.bf16 %v1614, %v1614
      %v1870 = vpack.c.bf16 %v1617, %v1617
      %v1871 = vpack.c.bf16 %v1619, %v1619
      %v1872 = vpack.c.bf16 %v1622, %v1622
      %v1873 = vpack.c.bf16 %v1624, %v1624
      %v1874 = vpack.c.bf16 %v1627, %v1627
      %v1875 = vpack.c.bf16 %v1629, %v1629
      %v1876 = vpack.c.bf16 %v1632, %v1632
      %v1877 = vpack.c.bf16 %v1634, %v1634
      %v1878 = vpack.c.bf16 %v1637, %v1637
      %v1879 = vpack.c.bf16 %v1639, %v1639
      %v1880 = vpack.c.bf16 %v1642, %v1642
      %v1881 = vpack.c.bf16 %v1644, %v1644
      %v1882 = vpack.c.bf16 %v1647, %v1647
      %v1883 = vpack.c.bf16 %v1649, %v1649
      %v1884 = vpack.c.bf16 %v1652, %v1652
      %v1885 = vpack.c.bf16 %v1654, %v1654
      %v1886 = vpack.c.bf16 %v1657, %v1657
      %v1887 = vpack.c.bf16 %v1659, %v1659
      %v1888 = vpack.c.bf16 %v1662, %v1662
      %v1889 = vpack.c.bf16 %v1664, %v1664
      %v1890 = vpack.c.bf16 %v1667, %v1667
      %v1891 = vpack.c.bf16 %v1669, %v1669
      %v1892 = vpack.c.bf16 %v1672, %v1672
      %v1893 = vpack.c.bf16 %v1674, %v1674
      %v1894 = vpack.c.bf16 %v1677, %v1677
      %v1895 = vpack.c.bf16 %v1679, %v1679
      %v1896 = vpack.c.bf16 %v1682, %v1682
      %v1897 = vpack.c.bf16 %v1684, %v1684
      %v1898 = vpack.c.bf16 %v1687, %v1687
      %v1899 = vpack.c.bf16 %v1689, %v1689
      %v1900 = vpack.c.bf16 %v1692, %v1692
      %v1901 = vpack.c.bf16 %v1694, %v1694
      %v1902 = vpack.c.bf16 %v1697, %v1697
      %v1903 = vpack.c.bf16 %v1699, %v1699
      %v1904 = vpack.c.bf16 %v1702, %v1702
      %v1905 = vpack.c.bf16 %v1704, %v1704
      %v1906 = vpack.c.bf16 %v1707, %v1707
      %v1907 = vpack.c.bf16 %v1709, %v1709
      %v1908 = vpack.c.bf16 %v1712, %v1712
      %v1909 = vpack.c.bf16 %v1714, %v1714
      %v1910 = vpack.c.bf16 %v1717, %v1717
      %v1911 = vpack.c.bf16 %v1719, %v1719
      %v1912 = vpack.c.bf16 %v1722, %v1722
      %v1913 = vpack.c.bf16 %v1724, %v1724
      %v1914 = vpack.c.bf16 %v1727, %v1727
      %v1915 = vpack.c.bf16 %v1729, %v1729
      %v1916 = vpack.c.bf16 %v1732, %v1732
      %v1917 = vpack.c.bf16 %v1734, %v1734
      %v1918 = vpack.c.bf16 %v1737, %v1737
      %v1919 = vpack.c.bf16 %v1739, %v1739
      %v1920 = vpack.c.bf16 %v1742, %v1742
      %v1921 = vpack.c.bf16 %v1744, %v1744
      %v1922 = vpack.c.bf16 %v1747, %v1747
      %v1923 = vpack.c.bf16 %v1749, %v1749
      %v1924 = vpack.c.bf16 %v1752, %v1752
      %v1925 = vpack.c.bf16 %v1754, %v1754
      %v1926 = vpack.c.bf16 %v1757, %v1757
      %v1927 = vpack.c.bf16 %v1759, %v1759
      %v1928 = vpack.c.bf16 %v1762, %v1762
      %v1929 = vpack.c.bf16 %v1764, %v1764
      %v1930 = vpack.c.bf16 %v1767, %v1767
      %v1931 = vpack.c.bf16 %v1769, %v1769
      %v1932 = vpack.c.bf16 %v1772, %v1772
      %v1933 = vpack.c.bf16 %v1774, %v1774
      %v1934 = vpack.c.bf16 %v1777, %v1777
      %v1935 = vpack.c.bf16 %v1779, %v1779
      %v1936 = vpack.c.bf16 %v1782, %v1782
      %v1937 = vpack.c.bf16 %v1784, %v1784
      %v1938 = vpack.c.bf16 %v1787, %v1787
      %v1939 = vpack.c.bf16 %v1789, %v1789
      %v1940 = vpack.c.bf16 %v1792, %v1792
      %v1941 = vpack.c.bf16 %v1794, %v1794
      %v1942 = vpack.c.bf16 %v1797, %v1797
      %v1943 = vpack.c.bf16 %v1799, %v1799
      %v1944 = vpack.c.bf16 %v1802, %v1802
      %v1945 = vpack.c.bf16 %v1804, %v1804
      %v1946 = vpack.c.bf16 %v1807, %v1807
      %v1947 = vpack.c.bf16 %v1809, %v1809
      %v1948 = vpack.c.bf16 %v1812, %v1812
      %v1949 = vpack.c.bf16 %v1814, %v1814
      %v1950 = vpack.c.bf16 %v1817, %v1817
      %v1951 = vpack.c.bf16 %v1819, %v1819
      %v1952 = vpack.c.bf16 %v1822, %v1822
      %v1953 = vpack.c.bf16 %v1824, %v1824
      %vm1954 = vcmask 519168
      %1955 = vst.msk [vmem:[%s185] sm:$0xf] %vm1954, %v1826
      %1956 = vst.msk [vmem:[%s185 + $0x4] sm:$0xf] %vm1954, %v1827
      %1957 = vst.msk [vmem:[%s185 + $0x8] sm:$0xf] %vm1954, %v1828
      %1958 = vst.msk [vmem:[%s185 + $0xc] sm:$0xf] %vm1954, %v1829
      %1959 = vst.msk [vmem:[%s185 + $0x10] sm:$0xf] %vm1954, %v1830
      %1960 = vst.msk [vmem:[%s185 + $0x14] sm:$0xf] %vm1954, %v1831
      %1961 = vst.msk [vmem:[%s185 + $0x18] sm:$0xf] %vm1954, %v1832
      %1962 = vst.msk [vmem:[%s185 + $0x1c] sm:$0xf] %vm1954, %v1833
      %1963 = vst.msk [vmem:[%s185 + $0x20] sm:$0xf] %vm1954, %v1834
      %1964 = vst.msk [vmem:[%s185 + $0x24] sm:$0xf] %vm1954, %v1835
      %1965 = vst.msk [vmem:[%s185 + $0x28] sm:$0xf] %vm1954, %v1836
      %1966 = vst.msk [vmem:[%s185 + $0x2c] sm:$0xf] %vm1954, %v1837
      %1967 = vst.msk [vmem:[%s185 + $0x30] sm:$0xf] %vm1954, %v1838
      %1968 = vst.msk [vmem:[%s185 + $0x34] sm:$0xf] %vm1954, %v1839
      %1969 = vst.msk [vmem:[%s185 + $0x38] sm:$0xf] %vm1954, %v1840
      %1970 = vst.msk [vmem:[%s185 + $0x3c] sm:$0xf] %vm1954, %v1841
      %1971 = vst.msk [vmem:[%s185 + $0x40] sm:$0xf] %vm1954, %v1842
      %1972 = vst.msk [vmem:[%s185 + $0x44] sm:$0xf] %vm1954, %v1843
      %1973 = vst.msk [vmem:[%s185 + $0x48] sm:$0xf] %vm1954, %v1844
      %1974 = vst.msk [vmem:[%s185 + $0x4c] sm:$0xf] %vm1954, %v1845
      %1975 = vst.msk [vmem:[%s185 + $0x50] sm:$0xf] %vm1954, %v1846
      %1976 = vst.msk [vmem:[%s185 + $0x54] sm:$0xf] %vm1954, %v1847
      %1977 = vst.msk [vmem:[%s185 + $0x58] sm:$0xf] %vm1954, %v1848
      %1978 = vst.msk [vmem:[%s185 + $0x5c] sm:$0xf] %vm1954, %v1849
      %1979 = vst.msk [vmem:[%s185 + $0x60] sm:$0xf] %vm1954, %v1850
      %1980 = vst.msk [vmem:[%s185 + $0x64] sm:$0xf] %vm1954, %v1851
      %1981 = vst.msk [vmem:[%s185 + $0x68] sm:$0xf] %vm1954, %v1852
      %1982 = vst.msk [vmem:[%s185 + $0x6c] sm:$0xf] %vm1954, %v1853
      %1983 = vst.msk [vmem:[%s185 + $0x70] sm:$0xf] %vm1954, %v1854
      %1984 = vst.msk [vmem:[%s185 + $0x74] sm:$0xf] %vm1954, %v1855
      %1985 = vst.msk [vmem:[%s185 + $0x78] sm:$0xf] %vm1954, %v1856
      %1986 = vst.msk [vmem:[%s185 + $0x7c] sm:$0xf] %vm1954, %v1857
      %1987 = vst.msk [vmem:[%s185 + $0x80] sm:$0xf] %vm1954, %v1858
      %1988 = vst.msk [vmem:[%s185 + $0x84] sm:$0xf] %vm1954, %v1859
      %1989 = vst.msk [vmem:[%s185 + $0x88] sm:$0xf] %vm1954, %v1860
      %1990 = vst.msk [vmem:[%s185 + $0x8c] sm:$0xf] %vm1954, %v1861
      %1991 = vst.msk [vmem:[%s185 + $0x90] sm:$0xf] %vm1954, %v1862
      %1992 = vst.msk [vmem:[%s185 + $0x94] sm:$0xf] %vm1954, %v1863
      %1993 = vst.msk [vmem:[%s185 + $0x98] sm:$0xf] %vm1954, %v1864
      %1994 = vst.msk [vmem:[%s185 + $0x9c] sm:$0xf] %vm1954, %v1865
      %1995 = vst.msk [vmem:[%s185 + $0xa0] sm:$0xf] %vm1954, %v1866
      %1996 = vst.msk [vmem:[%s185 + $0xa4] sm:$0xf] %vm1954, %v1867
      %1997 = vst.msk [vmem:[%s185 + $0xa8] sm:$0xf] %vm1954, %v1868
      %1998 = vst.msk [vmem:[%s185 + $0xac] sm:$0xf] %vm1954, %v1869
      %1999 = vst.msk [vmem:[%s185 + $0xb0] sm:$0xf] %vm1954, %v1870
      %2000 = vst.msk [vmem:[%s185 + $0xb4] sm:$0xf] %vm1954, %v1871
      %2001 = vst.msk [vmem:[%s185 + $0xb8] sm:$0xf] %vm1954, %v1872
      %2002 = vst.msk [vmem:[%s185 + $0xbc] sm:$0xf] %vm1954, %v1873
      %2003 = vst.msk [vmem:[%s185 + $0xc0] sm:$0xf] %vm1954, %v1874
      %2004 = vst.msk [vmem:[%s185 + $0xc4] sm:$0xf] %vm1954, %v1875
      %2005 = vst.msk [vmem:[%s185 + $0xc8] sm:$0xf] %vm1954, %v1876
      %2006 = vst.msk [vmem:[%s185 + $0xcc] sm:$0xf] %vm1954, %v1877
      %2007 = vst.msk [vmem:[%s185 + $0xd0] sm:$0xf] %vm1954, %v1878
      %2008 = vst.msk [vmem:[%s185 + $0xd4] sm:$0xf] %vm1954, %v1879
      %2009 = vst.msk [vmem:[%s185 + $0xd8] sm:$0xf] %vm1954, %v1880
      %2010 = vst.msk [vmem:[%s185 + $0xdc] sm:$0xf] %vm1954, %v1881
      %2011 = vst.msk [vmem:[%s185 + $0xe0] sm:$0xf] %vm1954, %v1882
      %2012 = vst.msk [vmem:[%s185 + $0xe4] sm:$0xf] %vm1954, %v1883
      %2013 = vst.msk [vmem:[%s185 + $0xe8] sm:$0xf] %vm1954, %v1884
      %2014 = vst.msk [vmem:[%s185 + $0xec] sm:$0xf] %vm1954, %v1885
      %2015 = vst.msk [vmem:[%s185 + $0xf0] sm:$0xf] %vm1954, %v1886
      %2016 = vst.msk [vmem:[%s185 + $0xf4] sm:$0xf] %vm1954, %v1887
      %2017 = vst.msk [vmem:[%s185 + $0xf8] sm:$0xf] %vm1954, %v1888
      %2018 = vst.msk [vmem:[%s185 + $0xfc] sm:$0xf] %vm1954, %v1889
      %2019 = vst.msk [vmem:[%s185 + $0x100] sm:$0xf] %vm1954, %v1890
      %2020 = vst.msk [vmem:[%s185 + $0x104] sm:$0xf] %vm1954, %v1891
      %2021 = vst.msk [vmem:[%s185 + $0x108] sm:$0xf] %vm1954, %v1892
      %2022 = vst.msk [vmem:[%s185 + $0x10c] sm:$0xf] %vm1954, %v1893
      %2023 = vst.msk [vmem:[%s185 + $0x110] sm:$0xf] %vm1954, %v1894
      %2024 = vst.msk [vmem:[%s185 + $0x114] sm:$0xf] %vm1954, %v1895
      %2025 = vst.msk [vmem:[%s185 + $0x118] sm:$0xf] %vm1954, %v1896
      %2026 = vst.msk [vmem:[%s185 + $0x11c] sm:$0xf] %vm1954, %v1897
      %2027 = vst.msk [vmem:[%s185 + $0x120] sm:$0xf] %vm1954, %v1898
      %2028 = vst.msk [vmem:[%s185 + $0x124] sm:$0xf] %vm1954, %v1899
      %2029 = vst.msk [vmem:[%s185 + $0x128] sm:$0xf] %vm1954, %v1900
      %2030 = vst.msk [vmem:[%s185 + $0x12c] sm:$0xf] %vm1954, %v1901
      %2031 = vst.msk [vmem:[%s185 + $0x130] sm:$0xf] %vm1954, %v1902
      %2032 = vst.msk [vmem:[%s185 + $0x134] sm:$0xf] %vm1954, %v1903
      %2033 = vst.msk [vmem:[%s185 + $0x138] sm:$0xf] %vm1954, %v1904
      %2034 = vst.msk [vmem:[%s185 + $0x13c] sm:$0xf] %vm1954, %v1905
      %2035 = vst.msk [vmem:[%s185 + $0x140] sm:$0xf] %vm1954, %v1906
      %2036 = vst.msk [vmem:[%s185 + $0x144] sm:$0xf] %vm1954, %v1907
      %2037 = vst.msk [vmem:[%s185 + $0x148] sm:$0xf] %vm1954, %v1908
      %2038 = vst.msk [vmem:[%s185 + $0x14c] sm:$0xf] %vm1954, %v1909
      %2039 = vst.msk [vmem:[%s185 + $0x150] sm:$0xf] %vm1954, %v1910
      %2040 = vst.msk [vmem:[%s185 + $0x154] sm:$0xf] %vm1954, %v1911
      %2041 = vst.msk [vmem:[%s185 + $0x158] sm:$0xf] %vm1954, %v1912
      %2042 = vst.msk [vmem:[%s185 + $0x15c] sm:$0xf] %vm1954, %v1913
      %2043 = vst.msk [vmem:[%s185 + $0x160] sm:$0xf] %vm1954, %v1914
      %2044 = vst.msk [vmem:[%s185 + $0x164] sm:$0xf] %vm1954, %v1915
      %2045 = vst.msk [vmem:[%s185 + $0x168] sm:$0xf] %vm1954, %v1916
      %2046 = vst.msk [vmem:[%s185 + $0x16c] sm:$0xf] %vm1954, %v1917
      %2047 = vst.msk [vmem:[%s185 + $0x170] sm:$0xf] %vm1954, %v1918
      %2048 = vst.msk [vmem:[%s185 + $0x174] sm:$0xf] %vm1954, %v1919
      %2049 = vst.msk [vmem:[%s185 + $0x178] sm:$0xf] %vm1954, %v1920
      %2050 = vst.msk [vmem:[%s185 + $0x17c] sm:$0xf] %vm1954, %v1921
      %2051 = vst.msk [vmem:[%s185 + $0x180] sm:$0xf] %vm1954, %v1922
      %2052 = vst.msk [vmem:[%s185 + $0x184] sm:$0xf] %vm1954, %v1923
      %2053 = vst.msk [vmem:[%s185 + $0x188] sm:$0xf] %vm1954, %v1924
      %2054 = vst.msk [vmem:[%s185 + $0x18c] sm:$0xf] %vm1954, %v1925
      %2055 = vst.msk [vmem:[%s185 + $0x190] sm:$0xf] %vm1954, %v1926
      %2056 = vst.msk [vmem:[%s185 + $0x194] sm:$0xf] %vm1954, %v1927
      %2057 = vst.msk [vmem:[%s185 + $0x198] sm:$0xf] %vm1954, %v1928
      %2058 = vst.msk [vmem:[%s185 + $0x19c] sm:$0xf] %vm1954, %v1929
      %2059 = vst.msk [vmem:[%s185 + $0x1a0] sm:$0xf] %vm1954, %v1930
      %2060 = vst.msk [vmem:[%s185 + $0x1a4] sm:$0xf] %vm1954, %v1931
      %2061 = vst.msk [vmem:[%s185 + $0x1a8] sm:$0xf] %vm1954, %v1932
      %2062 = vst.msk [vmem:[%s185 + $0x1ac] sm:$0xf] %vm1954, %v1933
      %2063 = vst.msk [vmem:[%s185 + $0x1b0] sm:$0xf] %vm1954, %v1934
      %2064 = vst.msk [vmem:[%s185 + $0x1b4] sm:$0xf] %vm1954, %v1935
      %2065 = vst.msk [vmem:[%s185 + $0x1b8] sm:$0xf] %vm1954, %v1936
      %2066 = vst.msk [vmem:[%s185 + $0x1bc] sm:$0xf] %vm1954, %v1937
      %2067 = vst.msk [vmem:[%s185 + $0x1c0] sm:$0xf] %vm1954, %v1938
      %2068 = vst.msk [vmem:[%s185 + $0x1c4] sm:$0xf] %vm1954, %v1939
      %2069 = vst.msk [vmem:[%s185 + $0x1c8] sm:$0xf] %vm1954, %v1940
      %2070 = vst.msk [vmem:[%s185 + $0x1cc] sm:$0xf] %vm1954, %v1941
      %2071 = vst.msk [vmem:[%s185 + $0x1d0] sm:$0xf] %vm1954, %v1942
      %2072 = vst.msk [vmem:[%s185 + $0x1d4] sm:$0xf] %vm1954, %v1943
      %2073 = vst.msk [vmem:[%s185 + $0x1d8] sm:$0xf] %vm1954, %v1944
      %2074 = vst.msk [vmem:[%s185 + $0x1dc] sm:$0xf] %vm1954, %v1945
      %2075 = vst.msk [vmem:[%s185 + $0x1e0] sm:$0xf] %vm1954, %v1946
      %2076 = vst.msk [vmem:[%s185 + $0x1e4] sm:$0xf] %vm1954, %v1947
      %2077 = vst.msk [vmem:[%s185 + $0x1e8] sm:$0xf] %vm1954, %v1948
      %2078 = vst.msk [vmem:[%s185 + $0x1ec] sm:$0xf] %vm1954, %v1949
      %2079 = vst.msk [vmem:[%s185 + $0x1f0] sm:$0xf] %vm1954, %v1950
      %2080 = vst.msk [vmem:[%s185 + $0x1f4] sm:$0xf] %vm1954, %v1951
      %2081 = vst.msk [vmem:[%s185 + $0x1f8] sm:$0xf] %vm1954, %v1952
      %2082 = vst.msk [vmem:[%s185 + $0x1fc] sm:$0xf] %vm1954, %v1953
      %s2083 = smul.u32 128, %s17
      %p2084 = scmp.lt.s32.totalorder %s2083, 255
      %s2085 = scalar_select %p2084, %s2083, 255
      %p2086 = scmp.lt.s32.totalorder %s18, 0
      %s2087 = scalar_select %p2086, %s18, 0
      %s2088 = sadd.s32 %s2087, %s2085
      %s2089 = smul.addr %s2088, 4
      %s2090 = scalar_lea.vmem %s2, %s2089
      // Predicated region
      $region29: #{tpu_custom_call.1} parent=27 // pred_check
        %p2091 = pneg %p97
      $region30: #{tpu_custom_call.1} parent=27 // pred_check_branch
        %2093 = sbr.rel (%p2091) target = $region32
      $region31: #{tpu_custom_call.1} parent=27 // pred_region
        %s2094 = smul.u32 128, %s17
      $region32: #{tpu_custom_call.1} parent=27 // pred_fallthru
        _
    $region28: #{tpu_custom_call.1} parent=5 // pred_fallthru
      _
    %p2095 = scmp.le.s32.totalorder 2, %s8
    // Predicated region
    $region33: #{tpu_custom_call.1} parent=5 // pred_check
      %p2096 = pneg %p2095
    $region34: #{tpu_custom_call.1} parent=5 // pred_check_branch
      %2098 = sbr.rel (%p2096) target = $region36
    $region35: #{tpu_custom_call.1} parent=5 // pred_region
      %s2099 = ssub.s32 %s8, 2
      // Predicated region
      $region37: #{tpu_custom_call.1} parent=35 // pred_check
        %p2100 = pneg %p103
      $region38: #{tpu_custom_call.1} parent=35 // pred_check_branch
        %2102 = sbr.rel (%p2100) target = $region40
      $region39: #{tpu_custom_call.1} parent=35 // pred_region
        %s2103 = smul.u32 128, %s19
        %p2104 = scmp.lt.s32.totalorder %s2103, 255
        %s2105 = scalar_select %p2104, %s2103, 255
        %p2106 = scmp.lt.s32.totalorder %s20, 0
        %s2107 = scalar_select %p2106, %s20, 0
        %s2108 = sadd.s32 %s2107, %s2105
        %s2109 = smul.addr %s2108, 4
        %s2110 = scalar_lea.vmem %s2, %s2109
      $region40: #{tpu_custom_call.1} parent=35 // pred_fallthru
        _
    $region36: #{tpu_custom_call.1} parent=5 // pred_fallthru
      _
  $region6: #{tpu_custom_call.1} parent=0 // loop_footer
    %s12 = sadd.s32 1, %s8
  $region7: #{tpu_custom_call.1} parent=0 // loop_footer_branch
    %7 = sbr.rel target = $region3
  $region8: #{tpu_custom_call.1} parent=0 // loop_exit
    _

</llo_original>
